<compile_context>
chip_gen: v5e
topology: v5e:2x2
jax: 0.10.0
libtpu: 0.0.40
codegen_flags: <defaults>
</compile_context>

<pallas_src>
import jax
import jax.numpy as jnp
from jax import lax
from jax.experimental import pallas as pl
from jax.experimental.pallas import tpu as pltpu


def _rtrbm_kernel(v_ref, wt_ref, ut_ref, w_ref, bh_ref, binit_ref, bv_ref,
                  uh_ref, uv_ref, vmodel_ref, rdata_ref, rmodel_ref):
    T, B, V = v_ref.shape
    H = wt_ref.shape[1]
    TB = T * B

    Wt = wt_ref[...]          # (V, H)  pre-transposed in the wrapper
    Ut = ut_ref[...]          # (H, H)  pre-transposed in the wrapper
    W_hv = w_ref[...]         # (H, V)
    b_h = bh_ref[...]         # (1, H)
    b_init = binit_ref[...]   # (1, H)
    b_v = bv_ref[...]         # (1, V)

    def recurrence(v_flat, r_dst_ref):
        # Hoist the W.v term out of the time loop: one (T*B,V)x(V,H) matmul
        # instead of T tiny (B,V)x(V,H) matmuls.  Pre-activations are parked in
        # the destination ref (same shape) and overwritten in place, so no
        # extra VMEM scratch is needed.
        pre = jnp.dot(v_flat, Wt, preferred_element_type=jnp.float32)   # (TB, H)
        r_dst_ref[...] = pre.reshape(T, B, H)

        # t = 0 layer: U := 0, bias := b_init
        r0 = jax.nn.sigmoid(r_dst_ref[0] + b_init)
        r_dst_ref[0] = r0

        def body(t, r_prev):
            r_t = jax.nn.sigmoid(
                r_dst_ref[t]
                + jnp.dot(r_prev, Ut, preferred_element_type=jnp.float32)
                + b_h)
            r_dst_ref[t] = r_t
            return r_t

        # T is static and small: fully unroll so the scheduler can interleave
        # the EUP sigmoid with the next step's matmul push.
        lax.fori_loop(1, T, body, r0, unroll=True)

    # --- r_data: sequential mean-field pass over the data ------------------
    v_flat = v_ref[...].reshape(TB, V)
    recurrence(v_flat, rdata_ref)

    # --- h_model ~ Bernoulli(r_data) ----------------------------------------
    # h_mean == r_data (the recurrence already produced sigmoid(Wv + Ur_lag + b)),
    # so no recompute is needed — just compare against the uniforms.
    r_flat = rdata_ref[...].reshape(TB, H)
    h_flat = (uh_ref[...].reshape(TB, H) < r_flat).astype(jnp.float32)

    # --- v_model ~ Bernoulli(sigmoid(W^T h_model + b_v)), flattened matmul ---
    v_prob = jax.nn.sigmoid(
        jnp.dot(h_flat, W_hv, preferred_element_type=jnp.float32) + b_v)
    v_model_flat = (uv_ref[...].reshape(TB, V) < v_prob).astype(jnp.float32)
    vmodel_ref[...] = v_model_flat.reshape(T, B, V)

    # --- r_model: sequential mean-field pass over the sampled visibles ------
    recurrence(v_model_flat, rmodel_ref)


def rtrbm_forward(v_data_vtb, W, U, b_h, b_init, b_v, key):
    """v_data_vtb: (V, T, B) like the PyTorch module.  Returns tensors in the
    PyTorch layout: v_model (V,T,B), r_data (H,T,B), r_model (H,T,B)."""
    V, T, B = v_data_vtb.shape
    H = W.shape[0]

    # (V,T,B) -> (T,B,V): features to lanes, batch to sublanes.
    # TODO(synk): at large sizes fold this layout change into the producer /
    # consumer instead of paying two extra HBM passes around the kernel.
    v_tbv = jnp.transpose(v_data_vtb, (1, 2, 0)).astype(jnp.float32)

    # Uniforms for the Bernoulli draws (same distribution as torch.bernoulli,
    # not bit-identical).  Drawn outside the kernel so the kernel body contains
    # no TPU-only PRNG primitives.
    k_h, k_v = jax.random.split(key)
    u_h = jax.random.uniform(k_h, (T, B, H), jnp.float32)
    u_v = jax.random.uniform(k_v, (T, B, V), jnp.float32)

    Wf = jnp.asarray(W, jnp.float32)        # (H, V)
    Wt = Wf.T                               # (V, H) — transposed once in XLA
    Ut = jnp.asarray(U, jnp.float32).T      # (H, H)
    bh2 = jnp.reshape(jnp.asarray(b_h, jnp.float32), (1, H))
    bi2 = jnp.reshape(jnp.asarray(b_init, jnp.float32), (1, H))
    bv2 = jnp.reshape(jnp.asarray(b_v, jnp.float32), (1, V))

    # Batch grid: the recurrence is sequential only in T and independent in B.
    if B > 8 and B % 8 == 0:
        b_tile = 8
    else:
        b_tile = B
    grid = (B // b_tile,)

    bmap = lambda b: (0, b, 0)     # slice batch
    pmap = lambda b: (0, 0)        # parameters: same block every step

    out_shapes = (
        jax.ShapeDtypeStruct((T, B, V), jnp.float32),   # v_model
        jax.ShapeDtypeStruct((T, B, H), jnp.float32),   # r_data
        jax.ShapeDtypeStruct((T, B, H), jnp.float32),   # r_model
    )

    v_model, r_data, r_model = pl.pallas_call(
        _rtrbm_kernel,
        out_shape=out_shapes,
        grid=grid,
        in_specs=[
            pl.BlockSpec((T, b_tile, V), bmap),   # v_data (T,B,V)
            pl.BlockSpec((V, H), pmap),           # W^T
            pl.BlockSpec((H, H), pmap),           # U^T
            pl.BlockSpec((H, V), pmap),           # W
            pl.BlockSpec((1, H), pmap),           # b_h
            pl.BlockSpec((1, H), pmap),           # b_init
            pl.BlockSpec((1, V), pmap),           # b_v
            pl.BlockSpec((T, b_tile, H), bmap),   # uniforms for h sampling
            pl.BlockSpec((T, b_tile, V), bmap),   # uniforms for v sampling
        ],
        out_specs=(
            pl.BlockSpec((T, b_tile, V), bmap),
            pl.BlockSpec((T, b_tile, H), bmap),
            pl.BlockSpec((T, b_tile, H), bmap),
        ),
        compiler_params=pltpu.CompilerParams(
            dimension_semantics=("parallel",)),
    )(v_tbv, Wt, Ut, Wf, bh2, bi2, bv2, u_h, u_v)

    # Back to the PyTorch (feature, T, batch) layout.
    return (jnp.transpose(v_model, (2, 0, 1)),
            jnp.transpose(r_data, (2, 0, 1)),
            jnp.transpose(r_model, (2, 0, 1)))


def _ref_r_data(v_tbv, W, U, b_h, b_init):
    """Pure-JAX reference for the deterministic r_data recurrence."""
    T = v_tbv.shape[0]
    hp = lax.Precision.HIGHEST
    rs, r_prev = [], None
    for t in range(T):
        pre = jnp.dot(v_tbv[t], W.T, precision=hp)
        if t == 0:
            r_t = jax.nn.sigmoid(pre + b_init[None, :])
        else:
            r_t = jax.nn.sigmoid(pre + jnp.dot(r_prev, U.T, precision=hp)
                                 + b_h[None, :])
        rs.append(r_t)
        r_prev = r_t
    return jnp.stack(rs)   # (T, B, H)


if __name__ == "__main__":
    n_hidden, n_visible, T, batch = 32, 16, 8, 16

    key = jax.random.PRNGKey(0)
    k_w, k_u, k_v, k_s = jax.random.split(key, 4)

    # xavier_uniform with sigmoid gain (= 1.0), zero biases — mirrors _init_params
    bw = jnp.sqrt(6.0 / (n_hidden + n_visible))
    bu = jnp.sqrt(6.0 / (n_hidden + n_hidden))
    W = jax.random.uniform(k_w, (n_hidden, n_visible), jnp.float32, -bw, bw)
    U = jax.random.uniform(k_u, (n_hidden, n_hidden), jnp.float32, -bu, bu)
    b_h = jnp.zeros((n_hidden,), jnp.float32)
    b_init = jnp.zeros((n_hidden,), jnp.float32)
    b_v = jnp.zeros((n_visible,), jnp.float32)

    # binary visible data in PyTorch layout (V, T, B)
    v_data = (jax.random.uniform(k_v, (n_visible, T, batch)) < 0.5).astype(jnp.float32)

    v_model, r_data, r_model = rtrbm_forward(v_data, W, U, b_h, b_init, b_v, key=k_s)
    jax.block_until_ready((v_model, r_data, r_model))

    # Check the deterministic part against a pure-JAX reference.
    v_tbv = jnp.transpose(v_data, (1, 2, 0))
    r_ref = _ref_r_data(v_tbv, W, U, b_h, b_init)          # (T, B, H)
    r_got = jnp.transpose(r_data, (1, 2, 0))               # (H,T,B) -> (T,B,H)
    max_err = float(jnp.max(jnp.abs(r_got - r_ref)))
    assert max_err < 1e-3, f"r_data mismatch, max err {max_err}"

    # Sampled visibles must be binary; shapes must match the module's layout.
    assert v_model.shape == (n_visible, T, batch)
    assert r_data.shape == (n_hidden, T, batch)
    assert r_model.shape == (n_hidden, T, batch)
    assert bool(jnp.all((v_model == 0.0) | (v_model == 1.0)))
    assert bool(jnp.all((r_data >= 0.0) & (r_data <= 1.0)))
    assert bool(jnp.all((r_model >= 0.0) & (r_model <= 1.0)))

    print("KERNEL_OK")
</pallas_src>

<mosaic_0001>
module attributes {stable_mosaic.version = 11 : i64} {
  func.func @_rtrbm_kernel(%arg0: i32, %arg1: memref<8x8x16xf32, #tpu.memory_space<vmem>>, %arg2: memref<16x32xf32, #tpu.memory_space<vmem>>, %arg3: memref<32x32xf32, #tpu.memory_space<vmem>>, %arg4: memref<32x16xf32, #tpu.memory_space<vmem>>, %arg5: memref<1x32xf32, #tpu.memory_space<vmem>>, %arg6: memref<1x32xf32, #tpu.memory_space<vmem>>, %arg7: memref<1x16xf32, #tpu.memory_space<vmem>>, %arg8: memref<8x8x32xf32, #tpu.memory_space<vmem>>, %arg9: memref<8x8x16xf32, #tpu.memory_space<vmem>>, %arg10: memref<8x8x16xf32, #tpu.memory_space<vmem>>, %arg11: memref<8x8x32xf32, #tpu.memory_space<vmem>>, %arg12: memref<8x8x32xf32, #tpu.memory_space<vmem>>) attributes {dimension_semantics = [#tpu.dimension_semantics<parallel>], iteration_bounds = array<i64: 2>, scalar_prefetch = 0 : i64, scratch_operands = 0 : i64, tpu.core_type = #tpu.core_type<tc>, window_params = [{transform_indices = @transform_0, window_bounds = array<i64: 8, 8, 16>}, {pipeline_mode = #tpu.pipeline_mode<synchronous>, transform_indices = @transform_1, window_bounds = array<i64: 16, 32>}, {pipeline_mode = #tpu.pipeline_mode<synchronous>, transform_indices = @transform_2, window_bounds = array<i64: 32, 32>}, {pipeline_mode = #tpu.pipeline_mode<synchronous>, transform_indices = @transform_3, window_bounds = array<i64: 32, 16>}, {pipeline_mode = #tpu.pipeline_mode<synchronous>, transform_indices = @transform_4, window_bounds = array<i64: 1, 32>}, {pipeline_mode = #tpu.pipeline_mode<synchronous>, transform_indices = @transform_5, window_bounds = array<i64: 1, 32>}, {pipeline_mode = #tpu.pipeline_mode<synchronous>, transform_indices = @transform_6, window_bounds = array<i64: 1, 16>}, {transform_indices = @transform_7, window_bounds = array<i64: 8, 8, 32>}, {transform_indices = @transform_8, window_bounds = array<i64: 8, 8, 16>}, {transform_indices = @transform_9, window_bounds = array<i64: 8, 8, 16>}, {transform_indices = @transform_10, window_bounds = array<i64: 8, 8, 32>}, {transform_indices = @transform_11, window_bounds = array<i64: 8, 8, 32>}]} {
    %c0 = arith.constant 0 : index
    %c0_0 = arith.constant 0 : index
    %0 = vector.load %arg2[%c0, %c0_0] : memref<16x32xf32, #tpu.memory_space<vmem>>, vector<16x32xf32>
    %c0_1 = arith.constant 0 : index
    %c0_2 = arith.constant 0 : index
    %1 = vector.load %arg3[%c0_1, %c0_2] : memref<32x32xf32, #tpu.memory_space<vmem>>, vector<32x32xf32>
    %c0_3 = arith.constant 0 : index
    %c0_4 = arith.constant 0 : index
    %2 = vector.load %arg4[%c0_3, %c0_4] : memref<32x16xf32, #tpu.memory_space<vmem>>, vector<32x16xf32>
    %c0_5 = arith.constant 0 : index
    %c0_6 = arith.constant 0 : index
    %3 = vector.load %arg5[%c0_5, %c0_6] : memref<1x32xf32, #tpu.memory_space<vmem>>, vector<1x32xf32>
    %c0_7 = arith.constant 0 : index
    %c0_8 = arith.constant 0 : index
    %4 = vector.load %arg6[%c0_7, %c0_8] : memref<1x32xf32, #tpu.memory_space<vmem>>, vector<1x32xf32>
    %c0_9 = arith.constant 0 : index
    %c0_10 = arith.constant 0 : index
    %5 = vector.load %arg7[%c0_9, %c0_10] : memref<1x16xf32, #tpu.memory_space<vmem>>, vector<1x16xf32>
    %c0_11 = arith.constant 0 : index
    %c0_12 = arith.constant 0 : index
    %c0_13 = arith.constant 0 : index
    %6 = vector.load %arg1[%c0_11, %c0_12, %c0_13] : memref<8x8x16xf32, #tpu.memory_space<vmem>>, vector<8x8x16xf32>
    %7 = vector.shape_cast %6 : vector<8x8x16xf32> to vector<64x16xf32>
    %cst = arith.constant dense<0.000000e+00> : vector<64x32xf32>
    %8 = tpu.matmul %7, %0, %cst {dimension_numbers = #tpu.dot_dimension_numbers<[1], [0], [0], [1], [0, 0, 1, 1], [], []>} : vector<64x16xf32>, vector<16x32xf32>, vector<64x32xf32> -> vector<64x32xf32>
    %9 = vector.shape_cast %8 : vector<64x32xf32> to vector<8x8x32xf32>
    %c0_14 = arith.constant 0 : index
    %c0_15 = arith.constant 0 : index
    %c0_16 = arith.constant 0 : index
    %10 = vector.load %arg11[%c0_14, %c0_15, %c0_16] : memref<8x8x32xf32, #tpu.memory_space<vmem>>, vector<8x8x32xf32>
    tpu.vector_store %arg11[%c0_14, %c0_15, %c0_16], %9 {strides = array<i32>} : memref<8x8x32xf32, #tpu.memory_space<vmem>>, vector<8x8x32xf32>,
    %c0_17 = arith.constant 0 : index
    %c0_18 = arith.constant 0 : index
    %c0_19 = arith.constant 0 : index
    %11 = vector.load %arg11[%c0_17, %c0_18, %c0_19] : memref<8x8x32xf32, #tpu.memory_space<vmem>>, vector<1x8x32xf32>
    %12 = vector.shape_cast %11 : vector<1x8x32xf32> to vector<8x32xf32>
    %13 = vector.broadcast %4 : vector<1x32xf32> to vector<8x32xf32>
    %14 = arith.addf %12, %13 : vector<8x32xf32>
    %15 = arith.negf %14 : vector<8x32xf32>
    %16 = math.exp %15 : vector<8x32xf32>
    %cst_20 = arith.constant 1.000000e+00 : f32
    %17 = vector.broadcast %cst_20 : f32 to vector<8x32xf32>
    %18 = arith.addf %17, %16 : vector<8x32xf32>
    %19 = arith.divf %17, %18 : vector<8x32xf32>
    %c0_21 = arith.constant 0 : index
    %c0_22 = arith.constant 0 : index
    %c0_23 = arith.constant 0 : index
    %20 = vector.load %arg11[%c0_21, %c0_22, %c0_23] : memref<8x8x32xf32, #tpu.memory_space<vmem>>, vector<1x8x32xf32>
    %21 = vector.shape_cast %20 : vector<1x8x32xf32> to vector<8x32xf32>
    %22 = vector.shape_cast %19 : vector<8x32xf32> to vector<1x8x32xf32>
    tpu.vector_store %arg11[%c0_21, %c0_22, %c0_23], %22 {strides = array<i32>} : memref<8x8x32xf32, #tpu.memory_space<vmem>>, vector<1x8x32xf32>,
    %c1_i32 = arith.constant 1 : i32
    %23 = arith.index_cast %c1_i32 : i32 to index
    %c0_24 = arith.constant 0 : index
    %c0_25 = arith.constant 0 : index
    %24 = vector.load %arg11[%23, %c0_24, %c0_25] : memref<8x8x32xf32, #tpu.memory_space<vmem>>, vector<1x8x32xf32>
    %25 = vector.shape_cast %24 : vector<1x8x32xf32> to vector<8x32xf32>
    %cst_26 = arith.constant dense<0.000000e+00> : vector<8x32xf32>
    %26 = tpu.matmul %19, %1, %cst_26 {dimension_numbers = #tpu.dot_dimension_numbers<[1], [0], [0], [1], [0, 0, 1, 1], [], []>} : vector<8x32xf32>, vector<32x32xf32>, vector<8x32xf32> -> vector<8x32xf32>
    %27 = arith.addf %25, %26 : vector<8x32xf32>
    %28 = vector.broadcast %3 : vector<1x32xf32> to vector<8x32xf32>
    %29 = arith.addf %27, %28 : vector<8x32xf32>
    %30 = arith.negf %29 : vector<8x32xf32>
    %31 = math.exp %30 : vector<8x32xf32>
    %cst_27 = arith.constant 1.000000e+00 : f32
    %32 = vector.broadcast %cst_27 : f32 to vector<8x32xf32>
    %33 = arith.addf %32, %31 : vector<8x32xf32>
    %34 = arith.divf %32, %33 : vector<8x32xf32>
    %35 = arith.index_cast %c1_i32 : i32 to index
    %c0_28 = arith.constant 0 : index
    %c0_29 = arith.constant 0 : index
    %36 = vector.load %arg11[%35, %c0_28, %c0_29] : memref<8x8x32xf32, #tpu.memory_space<vmem>>, vector<1x8x32xf32>
    %37 = vector.shape_cast %36 : vector<1x8x32xf32> to vector<8x32xf32>
    %38 = vector.shape_cast %34 : vector<8x32xf32> to vector<1x8x32xf32>
    tpu.vector_store %arg11[%35, %c0_28, %c0_29], %38 {strides = array<i32>} : memref<8x8x32xf32, #tpu.memory_space<vmem>>, vector<1x8x32xf32>,
    %c2_i32 = arith.constant 2 : i32
    %39 = arith.index_cast %c2_i32 : i32 to index
    %c0_30 = arith.constant 0 : index
    %c0_31 = arith.constant 0 : index
    %40 = vector.load %arg11[%39, %c0_30, %c0_31] : memref<8x8x32xf32, #tpu.memory_space<vmem>>, vector<1x8x32xf32>
    %41 = vector.shape_cast %40 : vector<1x8x32xf32> to vector<8x32xf32>
    %cst_32 = arith.constant dense<0.000000e+00> : vector<8x32xf32>
    %42 = tpu.matmul %34, %1, %cst_32 {dimension_numbers = #tpu.dot_dimension_numbers<[1], [0], [0], [1], [0, 0, 1, 1], [], []>} : vector<8x32xf32>, vector<32x32xf32>, vector<8x32xf32> -> vector<8x32xf32>
    %43 = arith.addf %41, %42 : vector<8x32xf32>
    %44 = vector.broadcast %3 : vector<1x32xf32> to vector<8x32xf32>
    %45 = arith.addf %43, %44 : vector<8x32xf32>
    %46 = arith.negf %45 : vector<8x32xf32>
    %47 = math.exp %46 : vector<8x32xf32>
    %cst_33 = arith.constant 1.000000e+00 : f32
    %48 = vector.broadcast %cst_33 : f32 to vector<8x32xf32>
    %49 = arith.addf %48, %47 : vector<8x32xf32>
    %50 = arith.divf %48, %49 : vector<8x32xf32>
    %51 = arith.index_cast %c2_i32 : i32 to index
    %c0_34 = arith.constant 0 : index
    %c0_35 = arith.constant 0 : index
    %52 = vector.load %arg11[%51, %c0_34, %c0_35] : memref<8x8x32xf32, #tpu.memory_space<vmem>>, vector<1x8x32xf32>
    %53 = vector.shape_cast %52 : vector<1x8x32xf32> to vector<8x32xf32>
    %54 = vector.shape_cast %50 : vector<8x32xf32> to vector<1x8x32xf32>
    tpu.vector_store %arg11[%51, %c0_34, %c0_35], %54 {strides = array<i32>} : memref<8x8x32xf32, #tpu.memory_space<vmem>>, vector<1x8x32xf32>,
    %c3_i32 = arith.constant 3 : i32
    %55 = arith.index_cast %c3_i32 : i32 to index
    %c0_36 = arith.constant 0 : index
    %c0_37 = arith.constant 0 : index
    %56 = vector.load %arg11[%55, %c0_36, %c0_37] : memref<8x8x32xf32, #tpu.memory_space<vmem>>, vector<1x8x32xf32>
    %57 = vector.shape_cast %56 : vector<1x8x32xf32> to vector<8x32xf32>
    %cst_38 = arith.constant dense<0.000000e+00> : vector<8x32xf32>
    %58 = tpu.matmul %50, %1, %cst_38 {dimension_numbers = #tpu.dot_dimension_numbers<[1], [0], [0], [1], [0, 0, 1, 1], [], []>} : vector<8x32xf32>, vector<32x32xf32>, vector<8x32xf32> -> vector<8x32xf32>
    %59 = arith.addf %57, %58 : vector<8x32xf32>
    %60 = vector.broadcast %3 : vector<1x32xf32> to vector<8x32xf32>
    %61 = arith.addf %59, %60 : vector<8x32xf32>
    %62 = arith.negf %61 : vector<8x32xf32>
    %63 = math.exp %62 : vector<8x32xf32>
    %cst_39 = arith.constant 1.000000e+00 : f32
    %64 = vector.broadcast %cst_39 : f32 to vector<8x32xf32>
    %65 = arith.addf %64, %63 : vector<8x32xf32>
    %66 = arith.divf %64, %65 : vector<8x32xf32>
    %67 = arith.index_cast %c3_i32 : i32 to index
    %c0_40 = arith.constant 0 : index
    %c0_41 = arith.constant 0 : index
    %68 = vector.load %arg11[%67, %c0_40, %c0_41] : memref<8x8x32xf32, #tpu.memory_space<vmem>>, vector<1x8x32xf32>
    %69 = vector.shape_cast %68 : vector<1x8x32xf32> to vector<8x32xf32>
    %70 = vector.shape_cast %66 : vector<8x32xf32> to vector<1x8x32xf32>
    tpu.vector_store %arg11[%67, %c0_40, %c0_41], %70 {strides = array<i32>} : memref<8x8x32xf32, #tpu.memory_space<vmem>>, vector<1x8x32xf32>,
    %c4_i32 = arith.constant 4 : i32
    %71 = arith.index_cast %c4_i32 : i32 to index
    %c0_42 = arith.constant 0 : index
    %c0_43 = arith.constant 0 : index
    %72 = vector.load %arg11[%71, %c0_42, %c0_43] : memref<8x8x32xf32, #tpu.memory_space<vmem>>, vector<1x8x32xf32>
    %73 = vector.shape_cast %72 : vector<1x8x32xf32> to vector<8x32xf32>
    %cst_44 = arith.constant dense<0.000000e+00> : vector<8x32xf32>
    %74 = tpu.matmul %66, %1, %cst_44 {dimension_numbers = #tpu.dot_dimension_numbers<[1], [0], [0], [1], [0, 0, 1, 1], [], []>} : vector<8x32xf32>, vector<32x32xf32>, vector<8x32xf32> -> vector<8x32xf32>
    %75 = arith.addf %73, %74 : vector<8x32xf32>
    %76 = vector.broadcast %3 : vector<1x32xf32> to vector<8x32xf32>
    %77 = arith.addf %75, %76 : vector<8x32xf32>
    %78 = arith.negf %77 : vector<8x32xf32>
    %79 = math.exp %78 : vector<8x32xf32>
    %cst_45 = arith.constant 1.000000e+00 : f32
    %80 = vector.broadcast %cst_45 : f32 to vector<8x32xf32>
    %81 = arith.addf %80, %79 : vector<8x32xf32>
    %82 = arith.divf %80, %81 : vector<8x32xf32>
    %83 = arith.index_cast %c4_i32 : i32 to index
    %c0_46 = arith.constant 0 : index
    %c0_47 = arith.constant 0 : index
    %84 = vector.load %arg11[%83, %c0_46, %c0_47] : memref<8x8x32xf32, #tpu.memory_space<vmem>>, vector<1x8x32xf32>
    %85 = vector.shape_cast %84 : vector<1x8x32xf32> to vector<8x32xf32>
    %86 = vector.shape_cast %82 : vector<8x32xf32> to vector<1x8x32xf32>
    tpu.vector_store %arg11[%83, %c0_46, %c0_47], %86 {strides = array<i32>} : memref<8x8x32xf32, #tpu.memory_space<vmem>>, vector<1x8x32xf32>,
    %c5_i32 = arith.constant 5 : i32
    %87 = arith.index_cast %c5_i32 : i32 to index
    %c0_48 = arith.constant 0 : index
    %c0_49 = arith.constant 0 : index
    %88 = vector.load %arg11[%87, %c0_48, %c0_49] : memref<8x8x32xf32, #tpu.memory_space<vmem>>, vector<1x8x32xf32>
    %89 = vector.shape_cast %88 : vector<1x8x32xf32> to vector<8x32xf32>
    %cst_50 = arith.constant dense<0.000000e+00> : vector<8x32xf32>
    %90 = tpu.matmul %82, %1, %cst_50 {dimension_numbers = #tpu.dot_dimension_numbers<[1], [0], [0], [1], [0, 0, 1, 1], [], []>} : vector<8x32xf32>, vector<32x32xf32>, vector<8x32xf32> -> vector<8x32xf32>
    %91 = arith.addf %89, %90 : vector<8x32xf32>
    %92 = vector.broadcast %3 : vector<1x32xf32> to vector<8x32xf32>
    %93 = arith.addf %91, %92 : vector<8x32xf32>
    %94 = arith.negf %93 : vector<8x32xf32>
    %95 = math.exp %94 : vector<8x32xf32>
    %cst_51 = arith.constant 1.000000e+00 : f32
    %96 = vector.broadcast %cst_51 : f32 to vector<8x32xf32>
    %97 = arith.addf %96, %95 : vector<8x32xf32>
    %98 = arith.divf %96, %97 : vector<8x32xf32>
    %99 = arith.index_cast %c5_i32 : i32 to index
    %c0_52 = arith.constant 0 : index
    %c0_53 = arith.constant 0 : index
    %100 = vector.load %arg11[%99, %c0_52, %c0_53] : memref<8x8x32xf32, #tpu.memory_space<vmem>>, vector<1x8x32xf32>
    %101 = vector.shape_cast %100 : vector<1x8x32xf32> to vector<8x32xf32>
    %102 = vector.shape_cast %98 : vector<8x32xf32> to vector<1x8x32xf32>
    tpu.vector_store %arg11[%99, %c0_52, %c0_53], %102 {strides = array<i32>} : memref<8x8x32xf32, #tpu.memory_space<vmem>>, vector<1x8x32xf32>,
    %c6_i32 = arith.constant 6 : i32
    %103 = arith.index_cast %c6_i32 : i32 to index
    %c0_54 = arith.constant 0 : index
    %c0_55 = arith.constant 0 : index
    %104 = vector.load %arg11[%103, %c0_54, %c0_55] : memref<8x8x32xf32, #tpu.memory_space<vmem>>, vector<1x8x32xf32>
    %105 = vector.shape_cast %104 : vector<1x8x32xf32> to vector<8x32xf32>
    %cst_56 = arith.constant dense<0.000000e+00> : vector<8x32xf32>
    %106 = tpu.matmul %98, %1, %cst_56 {dimension_numbers = #tpu.dot_dimension_numbers<[1], [0], [0], [1], [0, 0, 1, 1], [], []>} : vector<8x32xf32>, vector<32x32xf32>, vector<8x32xf32> -> vector<8x32xf32>
    %107 = arith.addf %105, %106 : vector<8x32xf32>
    %108 = vector.broadcast %3 : vector<1x32xf32> to vector<8x32xf32>
    %109 = arith.addf %107, %108 : vector<8x32xf32>
    %110 = arith.negf %109 : vector<8x32xf32>
    %111 = math.exp %110 : vector<8x32xf32>
    %cst_57 = arith.constant 1.000000e+00 : f32
    %112 = vector.broadcast %cst_57 : f32 to vector<8x32xf32>
    %113 = arith.addf %112, %111 : vector<8x32xf32>
    %114 = arith.divf %112, %113 : vector<8x32xf32>
    %115 = arith.index_cast %c6_i32 : i32 to index
    %c0_58 = arith.constant 0 : index
    %c0_59 = arith.constant 0 : index
    %116 = vector.load %arg11[%115, %c0_58, %c0_59] : memref<8x8x32xf32, #tpu.memory_space<vmem>>, vector<1x8x32xf32>
    %117 = vector.shape_cast %116 : vector<1x8x32xf32> to vector<8x32xf32>
    %118 = vector.shape_cast %114 : vector<8x32xf32> to vector<1x8x32xf32>
    tpu.vector_store %arg11[%115, %c0_58, %c0_59], %118 {strides = array<i32>} : memref<8x8x32xf32, #tpu.memory_space<vmem>>, vector<1x8x32xf32>,
    %c7_i32 = arith.constant 7 : i32
    %119 = arith.index_cast %c7_i32 : i32 to index
    %c0_60 = arith.constant 0 : index
    %c0_61 = arith.constant 0 : index
    %120 = vector.load %arg11[%119, %c0_60, %c0_61] : memref<8x8x32xf32, #tpu.memory_space<vmem>>, vector<1x8x32xf32>
    %121 = vector.shape_cast %120 : vector<1x8x32xf32> to vector<8x32xf32>
    %cst_62 = arith.constant dense<0.000000e+00> : vector<8x32xf32>
    %122 = tpu.matmul %114, %1, %cst_62 {dimension_numbers = #tpu.dot_dimension_numbers<[1], [0], [0], [1], [0, 0, 1, 1], [], []>} : vector<8x32xf32>, vector<32x32xf32>, vector<8x32xf32> -> vector<8x32xf32>
    %123 = arith.addf %121, %122 : vector<8x32xf32>
    %124 = vector.broadcast %3 : vector<1x32xf32> to vector<8x32xf32>
    %125 = arith.addf %123, %124 : vector<8x32xf32>
    %126 = arith.negf %125 : vector<8x32xf32>
    %127 = math.exp %126 : vector<8x32xf32>
    %cst_63 = arith.constant 1.000000e+00 : f32
    %128 = vector.broadcast %cst_63 : f32 to vector<8x32xf32>
    %129 = arith.addf %128, %127 : vector<8x32xf32>
    %130 = arith.divf %128, %129 : vector<8x32xf32>
    %131 = arith.index_cast %c7_i32 : i32 to index
    %c0_64 = arith.constant 0 : index
    %c0_65 = arith.constant 0 : index
    %132 = vector.load %arg11[%131, %c0_64, %c0_65] : memref<8x8x32xf32, #tpu.memory_space<vmem>>, vector<1x8x32xf32>
    %133 = vector.shape_cast %132 : vector<1x8x32xf32> to vector<8x32xf32>
    %134 = vector.shape_cast %130 : vector<8x32xf32> to vector<1x8x32xf32>
    tpu.vector_store %arg11[%131, %c0_64, %c0_65], %134 {strides = array<i32>} : memref<8x8x32xf32, #tpu.memory_space<vmem>>, vector<1x8x32xf32>,
    %c7_i32_66 = arith.constant 7 : i32
    %c0_67 = arith.constant 0 : index
    %c0_68 = arith.constant 0 : index
    %c0_69 = arith.constant 0 : index
    %135 = vector.load %arg11[%c0_67, %c0_68, %c0_69] : memref<8x8x32xf32, #tpu.memory_space<vmem>>, vector<8x8x32xf32>
    %136 = vector.shape_cast %135 : vector<8x8x32xf32> to vector<64x32xf32>
    %c0_70 = arith.constant 0 : index
    %c0_71 = arith.constant 0 : index
    %c0_72 = arith.constant 0 : index
    %137 = vector.load %arg8[%c0_70, %c0_71, %c0_72] : memref<8x8x32xf32, #tpu.memory_space<vmem>>, vector<8x8x32xf32>
    %138 = vector.shape_cast %137 : vector<8x8x32xf32> to vector<64x32xf32>
    %139 = arith.cmpf olt, %138, %136 : vector<64x32xf32>
    %140 = arith.extui %139 : vector<64x32xi1> to vector<64x32xi32>
    %141 = arith.sitofp %140 : vector<64x32xi32> to vector<64x32xf32>
    %cst_73 = arith.constant dense<0.000000e+00> : vector<64x16xf32>
    %142 = tpu.matmul %141, %2, %cst_73 {dimension_numbers = #tpu.dot_dimension_numbers<[1], [0], [0], [1], [0, 0, 1, 1], [], []>} : vector<64x32xf32>, vector<32x16xf32>, vector<64x16xf32> -> vector<64x16xf32>
    %143 = vector.broadcast %5 : vector<1x16xf32> to vector<64x16xf32>
    %144 = arith.addf %142, %143 : vector<64x16xf32>
    %145 = arith.negf %144 : vector<64x16xf32>
    %146 = math.exp %145 : vector<64x16xf32>
    %cst_74 = arith.constant 1.000000e+00 : f32
    %147 = vector.broadcast %cst_74 : f32 to vector<64x16xf32>
    %148 = arith.addf %147, %146 : vector<64x16xf32>
    %149 = arith.divf %147, %148 : vector<64x16xf32>
    %c0_75 = arith.constant 0 : index
    %c0_76 = arith.constant 0 : index
    %c0_77 = arith.constant 0 : index
    %150 = vector.load %arg9[%c0_75, %c0_76, %c0_77] : memref<8x8x16xf32, #tpu.memory_space<vmem>>, vector<8x8x16xf32>
    %151 = vector.shape_cast %150 : vector<8x8x16xf32> to vector<64x16xf32>
    %152 = arith.cmpf olt, %151, %149 : vector<64x16xf32>
    %153 = arith.extui %152 : vector<64x16xi1> to vector<64x16xi32>
    %154 = arith.sitofp %153 : vector<64x16xi32> to vector<64x16xf32>
    %155 = vector.shape_cast %154 : vector<64x16xf32> to vector<8x8x16xf32>
    %c0_78 = arith.constant 0 : index
    %c0_79 = arith.constant 0 : index
    %c0_80 = arith.constant 0 : index
    %156 = vector.load %arg10[%c0_78, %c0_79, %c0_80] : memref<8x8x16xf32, #tpu.memory_space<vmem>>, vector<8x8x16xf32>
    tpu.vector_store %arg10[%c0_78, %c0_79, %c0_80], %155 {strides = array<i32>} : memref<8x8x16xf32, #tpu.memory_space<vmem>>, vector<8x8x16xf32>,
    %cst_81 = arith.constant dense<0.000000e+00> : vector<64x32xf32>
    %157 = tpu.matmul %154, %0, %cst_81 {dimension_numbers = #tpu.dot_dimension_numbers<[1], [0], [0], [1], [0, 0, 1, 1], [], []>} : vector<64x16xf32>, vector<16x32xf32>, vector<64x32xf32> -> vector<64x32xf32>
    %158 = vector.shape_cast %157 : vector<64x32xf32> to vector<8x8x32xf32>
    %c0_82 = arith.constant 0 : index
    %c0_83 = arith.constant 0 : index
    %c0_84 = arith.constant 0 : index
    %159 = vector.load %arg12[%c0_82, %c0_83, %c0_84] : memref<8x8x32xf32, #tpu.memory_space<vmem>>, vector<8x8x32xf32>
    tpu.vector_store %arg12[%c0_82, %c0_83, %c0_84], %158 {strides = array<i32>} : memref<8x8x32xf32, #tpu.memory_space<vmem>>, vector<8x8x32xf32>,
    %c0_85 = arith.constant 0 : index
    %c0_86 = arith.constant 0 : index
    %c0_87 = arith.constant 0 : index
    %160 = vector.load %arg12[%c0_85, %c0_86, %c0_87] : memref<8x8x32xf32, #tpu.memory_space<vmem>>, vector<1x8x32xf32>
    %161 = vector.shape_cast %160 : vector<1x8x32xf32> to vector<8x32xf32>
    %162 = vector.broadcast %4 : vector<1x32xf32> to vector<8x32xf32>
    %163 = arith.addf %161, %162 : vector<8x32xf32>
    %164 = arith.negf %163 : vector<8x32xf32>
    %165 = math.exp %164 : vector<8x32xf32>
    %cst_88 = arith.constant 1.000000e+00 : f32
    %166 = vector.broadcast %cst_88 : f32 to vector<8x32xf32>
    %167 = arith.addf %166, %165 : vector<8x32xf32>
    %168 = arith.divf %166, %167 : vector<8x32xf32>
    %c0_89 = arith.constant 0 : index
    %c0_90 = arith.constant 0 : index
    %c0_91 = arith.constant 0 : index
    %169 = vector.load %arg12[%c0_89, %c0_90, %c0_91] : memref<8x8x32xf32, #tpu.memory_space<vmem>>, vector<1x8x32xf32>
    %170 = vector.shape_cast %169 : vector<1x8x32xf32> to vector<8x32xf32>
    %171 = vector.shape_cast %168 : vector<8x32xf32> to vector<1x8x32xf32>
    tpu.vector_store %arg12[%c0_89, %c0_90, %c0_91], %171 {strides = array<i32>} : memref<8x8x32xf32, #tpu.memory_space<vmem>>, vector<1x8x32xf32>,
    %c1_i32_92 = arith.constant 1 : i32
    %172 = arith.index_cast %c1_i32_92 : i32 to index
    %c0_93 = arith.constant 0 : index
    %c0_94 = arith.constant 0 : index
    %173 = vector.load %arg12[%172, %c0_93, %c0_94] : memref<8x8x32xf32, #tpu.memory_space<vmem>>, vector<1x8x32xf32>
    %174 = vector.shape_cast %173 : vector<1x8x32xf32> to vector<8x32xf32>
    %cst_95 = arith.constant dense<0.000000e+00> : vector<8x32xf32>
    %175 = tpu.matmul %168, %1, %cst_95 {dimension_numbers = #tpu.dot_dimension_numbers<[1], [0], [0], [1], [0, 0, 1, 1], [], []>} : vector<8x32xf32>, vector<32x32xf32>, vector<8x32xf32> -> vector<8x32xf32>
    %176 = arith.addf %174, %175 : vector<8x32xf32>
    %177 = vector.broadcast %3 : vector<1x32xf32> to vector<8x32xf32>
    %178 = arith.addf %176, %177 : vector<8x32xf32>
    %179 = arith.negf %178 : vector<8x32xf32>
    %180 = math.exp %179 : vector<8x32xf32>
    %cst_96 = arith.constant 1.000000e+00 : f32
    %181 = vector.broadcast %cst_96 : f32 to vector<8x32xf32>
    %182 = arith.addf %181, %180 : vector<8x32xf32>
    %183 = arith.divf %181, %182 : vector<8x32xf32>
    %184 = arith.index_cast %c1_i32_92 : i32 to index
    %c0_97 = arith.constant 0 : index
    %c0_98 = arith.constant 0 : index
    %185 = vector.load %arg12[%184, %c0_97, %c0_98] : memref<8x8x32xf32, #tpu.memory_space<vmem>>, vector<1x8x32xf32>
    %186 = vector.shape_cast %185 : vector<1x8x32xf32> to vector<8x32xf32>
    %187 = vector.shape_cast %183 : vector<8x32xf32> to vector<1x8x32xf32>
    tpu.vector_store %arg12[%184, %c0_97, %c0_98], %187 {strides = array<i32>} : memref<8x8x32xf32, #tpu.memory_space<vmem>>, vector<1x8x32xf32>,
    %c2_i32_99 = arith.constant 2 : i32
    %188 = arith.index_cast %c2_i32_99 : i32 to index
    %c0_100 = arith.constant 0 : index
    %c0_101 = arith.constant 0 : index
    %189 = vector.load %arg12[%188, %c0_100, %c0_101] : memref<8x8x32xf32, #tpu.memory_space<vmem>>, vector<1x8x32xf32>
    %190 = vector.shape_cast %189 : vector<1x8x32xf32> to vector<8x32xf32>
    %cst_102 = arith.constant dense<0.000000e+00> : vector<8x32xf32>
    %191 = tpu.matmul %183, %1, %cst_102 {dimension_numbers = #tpu.dot_dimension_numbers<[1], [0], [0], [1], [0, 0, 1, 1], [], []>} : vector<8x32xf32>, vector<32x32xf32>, vector<8x32xf32> -> vector<8x32xf32>
    %192 = arith.addf %190, %191 : vector<8x32xf32>
    %193 = vector.broadcast %3 : vector<1x32xf32> to vector<8x32xf32>
    %194 = arith.addf %192, %193 : vector<8x32xf32>
    %195 = arith.negf %194 : vector<8x32xf32>
    %196 = math.exp %195 : vector<8x32xf32>
    %cst_103 = arith.constant 1.000000e+00 : f32
    %197 = vector.broadcast %cst_103 : f32 to vector<8x32xf32>
    %198 = arith.addf %197, %196 : vector<8x32xf32>
    %199 = arith.divf %197, %198 : vector<8x32xf32>
    %200 = arith.index_cast %c2_i32_99 : i32 to index
    %c0_104 = arith.constant 0 : index
    %c0_105 = arith.constant 0 : index
    %201 = vector.load %arg12[%200, %c0_104, %c0_105] : memref<8x8x32xf32, #tpu.memory_space<vmem>>, vector<1x8x32xf32>
    %202 = vector.shape_cast %201 : vector<1x8x32xf32> to vector<8x32xf32>
    %203 = vector.shape_cast %199 : vector<8x32xf32> to vector<1x8x32xf32>
    tpu.vector_store %arg12[%200, %c0_104, %c0_105], %203 {strides = array<i32>} : memref<8x8x32xf32, #tpu.memory_space<vmem>>, vector<1x8x32xf32>,
    %c3_i32_106 = arith.constant 3 : i32
    %204 = arith.index_cast %c3_i32_106 : i32 to index
    %c0_107 = arith.constant 0 : index
    %c0_108 = arith.constant 0 : index
    %205 = vector.load %arg12[%204, %c0_107, %c0_108] : memref<8x8x32xf32, #tpu.memory_space<vmem>>, vector<1x8x32xf32>
    %206 = vector.shape_cast %205 : vector<1x8x32xf32> to vector<8x32xf32>
    %cst_109 = arith.constant dense<0.000000e+00> : vector<8x32xf32>
    %207 = tpu.matmul %199, %1, %cst_109 {dimension_numbers = #tpu.dot_dimension_numbers<[1], [0], [0], [1], [0, 0, 1, 1], [], []>} : vector<8x32xf32>, vector<32x32xf32>, vector<8x32xf32> -> vector<8x32xf32>
    %208 = arith.addf %206, %207 : vector<8x32xf32>
    %209 = vector.broadcast %3 : vector<1x32xf32> to vector<8x32xf32>
    %210 = arith.addf %208, %209 : vector<8x32xf32>
    %211 = arith.negf %210 : vector<8x32xf32>
    %212 = math.exp %211 : vector<8x32xf32>
    %cst_110 = arith.constant 1.000000e+00 : f32
    %213 = vector.broadcast %cst_110 : f32 to vector<8x32xf32>
    %214 = arith.addf %213, %212 : vector<8x32xf32>
    %215 = arith.divf %213, %214 : vector<8x32xf32>
    %216 = arith.index_cast %c3_i32_106 : i32 to index
    %c0_111 = arith.constant 0 : index
    %c0_112 = arith.constant 0 : index
    %217 = vector.load %arg12[%216, %c0_111, %c0_112] : memref<8x8x32xf32, #tpu.memory_space<vmem>>, vector<1x8x32xf32>
    %218 = vector.shape_cast %217 : vector<1x8x32xf32> to vector<8x32xf32>
    %219 = vector.shape_cast %215 : vector<8x32xf32> to vector<1x8x32xf32>
    tpu.vector_store %arg12[%216, %c0_111, %c0_112], %219 {strides = array<i32>} : memref<8x8x32xf32, #tpu.memory_space<vmem>>, vector<1x8x32xf32>,
    %c4_i32_113 = arith.constant 4 : i32
    %220 = arith.index_cast %c4_i32_113 : i32 to index
    %c0_114 = arith.constant 0 : index
    %c0_115 = arith.constant 0 : index
    %221 = vector.load %arg12[%220, %c0_114, %c0_115] : memref<8x8x32xf32, #tpu.memory_space<vmem>>, vector<1x8x32xf32>
    %222 = vector.shape_cast %221 : vector<1x8x32xf32> to vector<8x32xf32>
    %cst_116 = arith.constant dense<0.000000e+00> : vector<8x32xf32>
    %223 = tpu.matmul %215, %1, %cst_116 {dimension_numbers = #tpu.dot_dimension_numbers<[1], [0], [0], [1], [0, 0, 1, 1], [], []>} : vector<8x32xf32>, vector<32x32xf32>, vector<8x32xf32> -> vector<8x32xf32>
    %224 = arith.addf %222, %223 : vector<8x32xf32>
    %225 = vector.broadcast %3 : vector<1x32xf32> to vector<8x32xf32>
    %226 = arith.addf %224, %225 : vector<8x32xf32>
    %227 = arith.negf %226 : vector<8x32xf32>
    %228 = math.exp %227 : vector<8x32xf32>
    %cst_117 = arith.constant 1.000000e+00 : f32
    %229 = vector.broadcast %cst_117 : f32 to vector<8x32xf32>
    %230 = arith.addf %229, %228 : vector<8x32xf32>
    %231 = arith.divf %229, %230 : vector<8x32xf32>
    %232 = arith.index_cast %c4_i32_113 : i32 to index
    %c0_118 = arith.constant 0 : index
    %c0_119 = arith.constant 0 : index
    %233 = vector.load %arg12[%232, %c0_118, %c0_119] : memref<8x8x32xf32, #tpu.memory_space<vmem>>, vector<1x8x32xf32>
    %234 = vector.shape_cast %233 : vector<1x8x32xf32> to vector<8x32xf32>
    %235 = vector.shape_cast %231 : vector<8x32xf32> to vector<1x8x32xf32>
    tpu.vector_store %arg12[%232, %c0_118, %c0_119], %235 {strides = array<i32>} : memref<8x8x32xf32, #tpu.memory_space<vmem>>, vector<1x8x32xf32>,
    %c5_i32_120 = arith.constant 5 : i32
    %236 = arith.index_cast %c5_i32_120 : i32 to index
    %c0_121 = arith.constant 0 : index
    %c0_122 = arith.constant 0 : index
    %237 = vector.load %arg12[%236, %c0_121, %c0_122] : memref<8x8x32xf32, #tpu.memory_space<vmem>>, vector<1x8x32xf32>
    %238 = vector.shape_cast %237 : vector<1x8x32xf32> to vector<8x32xf32>
    %cst_123 = arith.constant dense<0.000000e+00> : vector<8x32xf32>
    %239 = tpu.matmul %231, %1, %cst_123 {dimension_numbers = #tpu.dot_dimension_numbers<[1], [0], [0], [1], [0, 0, 1, 1], [], []>} : vector<8x32xf32>, vector<32x32xf32>, vector<8x32xf32> -> vector<8x32xf32>
    %240 = arith.addf %238, %239 : vector<8x32xf32>
    %241 = vector.broadcast %3 : vector<1x32xf32> to vector<8x32xf32>
    %242 = arith.addf %240, %241 : vector<8x32xf32>
    %243 = arith.negf %242 : vector<8x32xf32>
    %244 = math.exp %243 : vector<8x32xf32>
    %cst_124 = arith.constant 1.000000e+00 : f32
    %245 = vector.broadcast %cst_124 : f32 to vector<8x32xf32>
    %246 = arith.addf %245, %244 : vector<8x32xf32>
    %247 = arith.divf %245, %246 : vector<8x32xf32>
    %248 = arith.index_cast %c5_i32_120 : i32 to index
    %c0_125 = arith.constant 0 : index
    %c0_126 = arith.constant 0 : index
    %249 = vector.load %arg12[%248, %c0_125, %c0_126] : memref<8x8x32xf32, #tpu.memory_space<vmem>>, vector<1x8x32xf32>
    %250 = vector.shape_cast %249 : vector<1x8x32xf32> to vector<8x32xf32>
    %251 = vector.shape_cast %247 : vector<8x32xf32> to vector<1x8x32xf32>
    tpu.vector_store %arg12[%248, %c0_125, %c0_126], %251 {strides = array<i32>} : memref<8x8x32xf32, #tpu.memory_space<vmem>>, vector<1x8x32xf32>,
    %c6_i32_127 = arith.constant 6 : i32
    %252 = arith.index_cast %c6_i32_127 : i32 to index
    %c0_128 = arith.constant 0 : index
    %c0_129 = arith.constant 0 : index
    %253 = vector.load %arg12[%252, %c0_128, %c0_129] : memref<8x8x32xf32, #tpu.memory_space<vmem>>, vector<1x8x32xf32>
    %254 = vector.shape_cast %253 : vector<1x8x32xf32> to vector<8x32xf32>
    %cst_130 = arith.constant dense<0.000000e+00> : vector<8x32xf32>
    %255 = tpu.matmul %247, %1, %cst_130 {dimension_numbers = #tpu.dot_dimension_numbers<[1], [0], [0], [1], [0, 0, 1, 1], [], []>} : vector<8x32xf32>, vector<32x32xf32>, vector<8x32xf32> -> vector<8x32xf32>
    %256 = arith.addf %254, %255 : vector<8x32xf32>
    %257 = vector.broadcast %3 : vector<1x32xf32> to vector<8x32xf32>
    %258 = arith.addf %256, %257 : vector<8x32xf32>
    %259 = arith.negf %258 : vector<8x32xf32>
    %260 = math.exp %259 : vector<8x32xf32>
    %cst_131 = arith.constant 1.000000e+00 : f32
    %261 = vector.broadcast %cst_131 : f32 to vector<8x32xf32>
    %262 = arith.addf %261, %260 : vector<8x32xf32>
    %263 = arith.divf %261, %262 : vector<8x32xf32>
    %264 = arith.index_cast %c6_i32_127 : i32 to index
    %c0_132 = arith.constant 0 : index
    %c0_133 = arith.constant 0 : index
    %265 = vector.load %arg12[%264, %c0_132, %c0_133] : memref<8x8x32xf32, #tpu.memory_space<vmem>>, vector<1x8x32xf32>
    %266 = vector.shape_cast %265 : vector<1x8x32xf32> to vector<8x32xf32>
    %267 = vector.shape_cast %263 : vector<8x32xf32> to vector<1x8x32xf32>
    tpu.vector_store %arg12[%264, %c0_132, %c0_133], %267 {strides = array<i32>} : memref<8x8x32xf32, #tpu.memory_space<vmem>>, vector<1x8x32xf32>,
    %c7_i32_134 = arith.constant 7 : i32
    %268 = arith.index_cast %c7_i32_134 : i32 to index
    %c0_135 = arith.constant 0 : index
    %c0_136 = arith.constant 0 : index
    %269 = vector.load %arg12[%268, %c0_135, %c0_136] : memref<8x8x32xf32, #tpu.memory_space<vmem>>, vector<1x8x32xf32>
    %270 = vector.shape_cast %269 : vector<1x8x32xf32> to vector<8x32xf32>
    %cst_137 = arith.constant dense<0.000000e+00> : vector<8x32xf32>
    %271 = tpu.matmul %263, %1, %cst_137 {dimension_numbers = #tpu.dot_dimension_numbers<[1], [0], [0], [1], [0, 0, 1, 1], [], []>} : vector<8x32xf32>, vector<32x32xf32>, vector<8x32xf32> -> vector<8x32xf32>
    %272 = arith.addf %270, %271 : vector<8x32xf32>
    %273 = vector.broadcast %3 : vector<1x32xf32> to vector<8x32xf32>
    %274 = arith.addf %272, %273 : vector<8x32xf32>
    %275 = arith.negf %274 : vector<8x32xf32>
    %276 = math.exp %275 : vector<8x32xf32>
    %cst_138 = arith.constant 1.000000e+00 : f32
    %277 = vector.broadcast %cst_138 : f32 to vector<8x32xf32>
    %278 = arith.addf %277, %276 : vector<8x32xf32>
    %279 = arith.divf %277, %278 : vector<8x32xf32>
    %280 = arith.index_cast %c7_i32_134 : i32 to index
    %c0_139 = arith.constant 0 : index
    %c0_140 = arith.constant 0 : index
    %281 = vector.load %arg12[%280, %c0_139, %c0_140] : memref<8x8x32xf32, #tpu.memory_space<vmem>>, vector<1x8x32xf32>
    %282 = vector.shape_cast %281 : vector<1x8x32xf32> to vector<8x32xf32>
    %283 = vector.shape_cast %279 : vector<8x32xf32> to vector<1x8x32xf32>
    tpu.vector_store %arg12[%280, %c0_139, %c0_140], %283 {strides = array<i32>} : memref<8x8x32xf32, #tpu.memory_space<vmem>>, vector<1x8x32xf32>,
    %c7_i32_141 = arith.constant 7 : i32
    return
  }
  func.func @transform_0(%arg0: i32) -> (i32, i32, i32) {
    %c0_i32 = arith.constant 0 : i32
    %c0_i32_0 = arith.constant 0 : i32
    %c0_i32_1 = arith.constant 0 : i32
    return %c0_i32, %arg0, %c0_i32_0 : i32, i32, i32
  }
  func.func @transform_1(%arg0: i32) -> (i32, i32) {
    %c0_i32 = arith.constant 0 : i32
    %c0_i32_0 = arith.constant 0 : i32
    %c0_i32_1 = arith.constant 0 : i32
    return %c0_i32, %c0_i32_0 : i32, i32
  }
  func.func @transform_2(%arg0: i32) -> (i32, i32) {
    %c0_i32 = arith.constant 0 : i32
    %c0_i32_0 = arith.constant 0 : i32
    %c0_i32_1 = arith.constant 0 : i32
    return %c0_i32, %c0_i32_0 : i32, i32
  }
  func.func @transform_3(%arg0: i32) -> (i32, i32) {
    %c0_i32 = arith.constant 0 : i32
    %c0_i32_0 = arith.constant 0 : i32
    %c0_i32_1 = arith.constant 0 : i32
    return %c0_i32, %c0_i32_0 : i32, i32
  }
  func.func @transform_4(%arg0: i32) -> (i32, i32) {
    %c0_i32 = arith.constant 0 : i32
    %c0_i32_0 = arith.constant 0 : i32
    %c0_i32_1 = arith.constant 0 : i32
    return %c0_i32, %c0_i32_0 : i32, i32
  }
  func.func @transform_5(%arg0: i32) -> (i32, i32) {
    %c0_i32 = arith.constant 0 : i32
    %c0_i32_0 = arith.constant 0 : i32
    %c0_i32_1 = arith.constant 0 : i32
    return %c0_i32, %c0_i32_0 : i32, i32
  }
  func.func @transform_6(%arg0: i32) -> (i32, i32) {
    %c0_i32 = arith.constant 0 : i32
    %c0_i32_0 = arith.constant 0 : i32
    %c0_i32_1 = arith.constant 0 : i32
    return %c0_i32, %c0_i32_0 : i32, i32
  }
  func.func @transform_7(%arg0: i32) -> (i32, i32, i32) {
    %c0_i32 = arith.constant 0 : i32
    %c0_i32_0 = arith.constant 0 : i32
    %c0_i32_1 = arith.constant 0 : i32
    return %c0_i32, %arg0, %c0_i32_0 : i32, i32, i32
  }
  func.func @transform_8(%arg0: i32) -> (i32, i32, i32) {
    %c0_i32 = arith.constant 0 : i32
    %c0_i32_0 = arith.constant 0 : i32
    %c0_i32_1 = arith.constant 0 : i32
    return %c0_i32, %arg0, %c0_i32_0 : i32, i32, i32
  }
  func.func @transform_9(%arg0: i32) -> (i32, i32, i32) {
    %c0_i32 = arith.constant 0 : i32
    %c0_i32_0 = arith.constant 0 : i32
    %c0_i32_1 = arith.constant 0 : i32
    return %c0_i32, %arg0, %c0_i32_0 : i32, i32, i32
  }
  func.func @transform_10(%arg0: i32) -> (i32, i32, i32) {
    %c0_i32 = arith.constant 0 : i32
    %c0_i32_0 = arith.constant 0 : i32
    %c0_i32_1 = arith.constant 0 : i32
    return %c0_i32, %arg0, %c0_i32_0 : i32, i32, i32
  }
  func.func @transform_11(%arg0: i32) -> (i32, i32, i32) {
    %c0_i32 = arith.constant 0 : i32
    %c0_i32_0 = arith.constant 0 : i32
    %c0_i32_1 = arith.constant 0 : i32
    return %c0_i32, %arg0, %c0_i32_0 : i32, i32, i32
  }
}

</mosaic_0001>

<llo_original>
// kernel: tpu_custom_call.1
$region0: #{tpu_custom_call.1}
  #allocation0 [shape = 'u32[]', space=smem, size = 0x4, offset = 0x4, fixed_abs, tag = 'smem constant byte address 0x4 - core index']
  #allocation1 [shape = 'u32[72,128]{1,0:T(1,128)}', space=vmem, size = 0x9000, scoped, tag = 'internal scratch']
  %s0 = inlined_call_operand.hbm [shape: f32[8,16,16], index: 0, kind: input, shape index: {}]
  %s1 = inlined_call_operand.vmem [shape: f32[16,32], index: 1, kind: input, shape index: {}]
  %s2 = inlined_call_operand.vmem [shape: f32[32,32], index: 2, kind: input, shape index: {}]
  %s3 = inlined_call_operand.vmem [shape: f32[32,16], index: 3, kind: input, shape index: {}]
  %s4 = inlined_call_operand.vmem [shape: f32[1,32], index: 4, kind: input, shape index: {}]
  %s5 = inlined_call_operand.vmem [shape: f32[1,32], index: 5, kind: input, shape index: {}]
  %s6 = inlined_call_operand.vmem [shape: f32[1,16], index: 6, kind: input, shape index: {}]
  %s7 = inlined_call_operand.hbm [shape: f32[8,16,32], index: 7, kind: input, shape index: {}]
  %s8 = inlined_call_operand.hbm [shape: f32[8,16,16], index: 8, kind: input, shape index: {}]
  %s9 = inlined_call_operand.hbm [shape: f32[8,16,16], index: 9, kind: output, shape index: {0}]
  %s10 = inlined_call_operand.hbm [shape: f32[8,16,32], index: 10, kind: output, shape index: {1}]
  %s11 = inlined_call_operand.hbm [shape: f32[8,16,32], index: 11, kind: output, shape index: {2}]
  %12 = xla_tuple %s9, %s10, %s11
  %s13 = sld [smem:[#allocation0]]
  $region97: #{tpu_custom_call.1} parent=0
    _
  %s15 = ssub.s32 1, %s13
  %s16 = scalar_select 0, %s15, %s13
  $region1: #{tpu_custom_call.1} parent=0
    #allocation2 [shape = 'u8[65536]{0}', space=vmem, size = 0x10000, scoped, tag = 'input window, operand 0']
    #allocation3 [shape = 's32[2]{0}', space=sflag, size = 0x8, scoped, tag = 'scoped memory for tpu_custom_call.1']
    #allocation4 [shape = 's32[2]{0}', space=sflag, size = 0x8, scoped, tag = 'scoped memory for tpu_custom_call.1']
    #allocation5 [shape = 'u8[65536]{0}', space=vmem, size = 0x10000, scoped, tag = 'input window, operand 7']
    #allocation6 [shape = 's32[2]{0}', space=sflag, size = 0x8, scoped, tag = 'scoped memory for tpu_custom_call.1']
    #allocation7 [shape = 'u8[65536]{0}', space=vmem, size = 0x10000, scoped, tag = 'input window, operand 8']
    #allocation8 [shape = 'u8[65536]{0}', space=vmem, size = 0x10000, scoped, tag = 'output window, operand 0']
    #allocation9 [shape = 'u8[65536]{0}', space=vmem, size = 0x10000, scoped, tag = 'output window, operand 1']
    #allocation10 [shape = 's32[2]{0}', space=sflag, size = 0x8, scoped, tag = 'scoped memory for tpu_custom_call.1']
    #allocation11 [shape = 'u8[65536]{0}', space=vmem, size = 0x10000, scoped, tag = 'output window, operand 2']
    %17 = vsyncpa [#allocation3], 0
    %s18 = scalar_lea.sflag [#allocation3], 1
    %19 = vsyncpa %s18, 0
    %20 = vsyncpa [#allocation6], 0
    %s21 = scalar_lea.sflag [#allocation6], 1
    %22 = vsyncpa %s21, 0
    %23 = vsyncpa [#allocation4], 0
    %s24 = scalar_lea.sflag [#allocation4], 1
    %25 = vsyncpa %s24, 0
    %26 = vsyncpa [#allocation10], 0
    %s27 = scalar_lea.sflag [#allocation10], 1
    %28 = vsyncpa %s27, 0
    loop: start=0, step=1, limit=4
    $region2: #{tpu_custom_call.1} parent=1 // loop_pre_header
      _
    $region3: #{tpu_custom_call.1} parent=1 // loop_header
      %s30 = sphi 0, %s34
      %p31 = scmp.ge.s32.totalorder %s30, 4
      %s40 = sphi 0, %s42
      %s43 = sphi 0, %s40
      %s44 = sphi 0, %s43
      %s60 = sphi 0, %s44
      %s64 = sphi 0, %s64
      %s66 = sphi 0, %s64
      %s67 = sphi 0, %s66
      %s81 = sphi 0, %s67
      %s85 = sphi 0, %s85
      %s87 = sphi 0, %s85
      %s88 = sphi 0, %s87
      %s102 = sphi 0, %s88
      %s106 = sphi 0, %s106
      %s108 = sphi 0, %s106
      %s109 = sphi 0, %s108
      %s123 = sphi 0, %s109
      %s127 = sphi 0, %s127
      %s129 = sphi 0, %s127
      %s130 = sphi 0, %s129
      %s144 = sphi 0, %s130
      %s148 = sphi 0, %s148
      %s150 = sphi 0, %s148
      %s151 = sphi 0, %s150
      %s165 = sphi 0, %s151
      %s169 = sphi 0, %s169
      %s171 = sphi 0, %s169
      %s172 = sphi 0, %s171
      %s186 = sphi 0, %s172
      %s192 = sphi 0, %s194
      %s195 = sphi 0, %s192
      %s196 = sphi 0, %s195
      %s212 = sphi 0, %s196
      %s218 = sphi 0, %s220
      %s221 = sphi 0, %s218
      %s222 = sphi 0, %s221
      %s238 = sphi 0, %s222
      %s244 = sphi 0, %s246
      %s247 = sphi 0, %s244
      %s248 = sphi 0, %s247
      %s264 = sphi 0, %s248
      %s270 = sphi 0, %s272
      %s273 = sphi 0, %s270
      %s274 = sphi 0, %s273
      %s290 = sphi 0, %s274
      %s296 = sphi 0, %s298
      %s299 = sphi 0, %s296
      %s300 = sphi 0, %s299
      %s316 = sphi 0, %s300
    $region4: #{tpu_custom_call.1} parent=1 // loop_header_branch
      %33 = sbr.rel (%p31) target = $region8
    $region5: #{tpu_custom_call.1} parent=1 // loop_body
      %s35 = ssub.s32 %s30, 1
      %s36 = ssub.s32 %s30, 2
      %s37 = sadd.s32 %s30, 1
      %s38 = ssub.s32 %s30, %s37
      %p39 = scmp.eq.s32.totalorder %s38, 0
      %s41 = sadd.s32 %s40, 1
      %s42 = scalar_select %p39, %s40, %s41
      %p45 = pneg %p39
      %p46 = scmp.eq.s32.totalorder %s30, 1
      %p47 = por %p45, %p46
      %p48 = scmp.ne.s32.totalorder %s40, %s43
      %p49 = scmp.eq.s32.totalorder %s30, 0
      %p50 = por %p48, %p49
      %p51 = scmp.ne.s32.totalorder %s40, %s43
      %p52 = scmp.eq.s32.totalorder %s35, 1
      %p53 = por %p51, %p52
      %p54 = scmp.ne.s32.totalorder %s43, %s44
      %p55 = scmp.eq.s32.totalorder %s35, 0
      %p56 = por %p54, %p55
      %p57 = scmp.ne.s32.totalorder %s43, %s44
      %p58 = scmp.eq.s32.totalorder %s36, 1
      %p59 = por %p57, %p58
      %p61 = scmp.ne.s32.totalorder %s44, %s60
      %p62 = scmp.eq.s32.totalorder %s36, 0
      %p63 = por %p61, %p62
      %s65 = sadd.s32 %s64, 1
      %p68 = scmp.eq.s32.totalorder %s30, 1
      %p69 = scmp.ne.s32.totalorder %s64, %s66
      %p70 = scmp.eq.s32.totalorder %s30, 0
      %p71 = por %p69, %p70
      %p72 = scmp.ne.s32.totalorder %s64, %s66
      %p73 = scmp.eq.s32.totalorder %s35, 1
      %p74 = por %p72, %p73
      %p75 = scmp.ne.s32.totalorder %s66, %s67
      %p76 = scmp.eq.s32.totalorder %s35, 0
      %p77 = por %p75, %p76
      %p78 = scmp.ne.s32.totalorder %s66, %s67
      %p79 = scmp.eq.s32.totalorder %s36, 1
      %p80 = por %p78, %p79
      %p82 = scmp.ne.s32.totalorder %s67, %s81
      %p83 = scmp.eq.s32.totalorder %s36, 0
      %p84 = por %p82, %p83
      %s86 = sadd.s32 %s85, 1
      %p89 = scmp.eq.s32.totalorder %s30, 1
      %p90 = scmp.ne.s32.totalorder %s85, %s87
      %p91 = scmp.eq.s32.totalorder %s30, 0
      %p92 = por %p90, %p91
      %p93 = scmp.ne.s32.totalorder %s85, %s87
      %p94 = scmp.eq.s32.totalorder %s35, 1
      %p95 = por %p93, %p94
      %p96 = scmp.ne.s32.totalorder %s87, %s88
      %p97 = scmp.eq.s32.totalorder %s35, 0
      %p98 = por %p96, %p97
      %p99 = scmp.ne.s32.totalorder %s87, %s88
      %p100 = scmp.eq.s32.totalorder %s36, 1
      %p101 = por %p99, %p100
      %p103 = scmp.ne.s32.totalorder %s88, %s102
      %p104 = scmp.eq.s32.totalorder %s36, 0
      %p105 = por %p103, %p104
      %s107 = sadd.s32 %s106, 1
      %p110 = scmp.eq.s32.totalorder %s30, 1
      %p111 = scmp.ne.s32.totalorder %s106, %s108
      %p112 = scmp.eq.s32.totalorder %s30, 0
      %p113 = por %p111, %p112
      %p114 = scmp.ne.s32.totalorder %s106, %s108
      %p115 = scmp.eq.s32.totalorder %s35, 1
      %p116 = por %p114, %p115
      %p117 = scmp.ne.s32.totalorder %s108, %s109
      %p118 = scmp.eq.s32.totalorder %s35, 0
      %p119 = por %p117, %p118
      %p120 = scmp.ne.s32.totalorder %s108, %s109
      %p121 = scmp.eq.s32.totalorder %s36, 1
      %p122 = por %p120, %p121
      %p124 = scmp.ne.s32.totalorder %s109, %s123
      %p125 = scmp.eq.s32.totalorder %s36, 0
      %p126 = por %p124, %p125
      %s128 = sadd.s32 %s127, 1
      %p131 = scmp.eq.s32.totalorder %s30, 1
      %p132 = scmp.ne.s32.totalorder %s127, %s129
      %p133 = scmp.eq.s32.totalorder %s30, 0
      %p134 = por %p132, %p133
      %p135 = scmp.ne.s32.totalorder %s127, %s129
      %p136 = scmp.eq.s32.totalorder %s35, 1
      %p137 = por %p135, %p136
      %p138 = scmp.ne.s32.totalorder %s129, %s130
      %p139 = scmp.eq.s32.totalorder %s35, 0
      %p140 = por %p138, %p139
      %p141 = scmp.ne.s32.totalorder %s129, %s130
      %p142 = scmp.eq.s32.totalorder %s36, 1
      %p143 = por %p141, %p142
      %p145 = scmp.ne.s32.totalorder %s130, %s144
      %p146 = scmp.eq.s32.totalorder %s36, 0
      %p147 = por %p145, %p146
      %s149 = sadd.s32 %s148, 1
      %p152 = scmp.eq.s32.totalorder %s30, 1
      %p153 = scmp.ne.s32.totalorder %s148, %s150
      %p154 = scmp.eq.s32.totalorder %s30, 0
      %p155 = por %p153, %p154
      %p156 = scmp.ne.s32.totalorder %s148, %s150
      %p157 = scmp.eq.s32.totalorder %s35, 1
      %p158 = por %p156, %p157
      %p159 = scmp.ne.s32.totalorder %s150, %s151
      %p160 = scmp.eq.s32.totalorder %s35, 0
      %p161 = por %p159, %p160
      %p162 = scmp.ne.s32.totalorder %s150, %s151
      %p163 = scmp.eq.s32.totalorder %s36, 1
      %p164 = por %p162, %p163
      %p166 = scmp.ne.s32.totalorder %s151, %s165
      %p167 = scmp.eq.s32.totalorder %s36, 0
      %p168 = por %p166, %p167
      %s170 = sadd.s32 %s169, 1
      %p173 = scmp.eq.s32.totalorder %s30, 1
      %p174 = scmp.ne.s32.totalorder %s169, %s171
      %p175 = scmp.eq.s32.totalorder %s30, 0
      %p176 = por %p174, %p175
      %p177 = scmp.ne.s32.totalorder %s169, %s171
      %p178 = scmp.eq.s32.totalorder %s35, 1
      %p179 = por %p177, %p178
      %p180 = scmp.ne.s32.totalorder %s171, %s172
      %p181 = scmp.eq.s32.totalorder %s35, 0
      %p182 = por %p180, %p181
      %p183 = scmp.ne.s32.totalorder %s171, %s172
      %p184 = scmp.eq.s32.totalorder %s36, 1
      %p185 = por %p183, %p184
      %p187 = scmp.ne.s32.totalorder %s172, %s186
      %p188 = scmp.eq.s32.totalorder %s36, 0
      %p189 = por %p187, %p188
      %s190 = ssub.s32 %s30, %s37
      %p191 = scmp.eq.s32.totalorder %s190, 0
      %s193 = sadd.s32 %s192, 1
      %s194 = scalar_select %p191, %s192, %s193
      %p197 = pneg %p191
      %p198 = scmp.eq.s32.totalorder %s30, 1
      %p199 = por %p197, %p198
      %p200 = scmp.ne.s32.totalorder %s192, %s195
      %p201 = scmp.eq.s32.totalorder %s30, 0
      %p202 = por %p200, %p201
      %p203 = scmp.ne.s32.totalorder %s192, %s195
      %p204 = scmp.eq.s32.totalorder %s35, 1
      %p205 = por %p203, %p204
      %p206 = scmp.ne.s32.totalorder %s195, %s196
      %p207 = scmp.eq.s32.totalorder %s35, 0
      %p208 = por %p206, %p207
      %p209 = scmp.ne.s32.totalorder %s195, %s196
      %p210 = scmp.eq.s32.totalorder %s36, 1
      %p211 = por %p209, %p210
      %p213 = scmp.ne.s32.totalorder %s196, %s212
      %p214 = scmp.eq.s32.totalorder %s36, 0
      %p215 = por %p213, %p214
      %s216 = ssub.s32 %s30, %s37
      %p217 = scmp.eq.s32.totalorder %s216, 0
      %s219 = sadd.s32 %s218, 1
      %s220 = scalar_select %p217, %s218, %s219
      %p223 = pneg %p217
      %p224 = scmp.eq.s32.totalorder %s30, 1
      %p225 = por %p223, %p224
      %p226 = scmp.ne.s32.totalorder %s218, %s221
      %p227 = scmp.eq.s32.totalorder %s30, 0
      %p228 = por %p226, %p227
      %p229 = scmp.ne.s32.totalorder %s218, %s221
      %p230 = scmp.eq.s32.totalorder %s35, 1
      %p231 = por %p229, %p230
      %p232 = scmp.ne.s32.totalorder %s221, %s222
      %p233 = scmp.eq.s32.totalorder %s35, 0
      %p234 = por %p232, %p233
      %p235 = scmp.ne.s32.totalorder %s221, %s222
      %p236 = scmp.eq.s32.totalorder %s36, 1
      %p237 = por %p235, %p236
      %p239 = scmp.ne.s32.totalorder %s222, %s238
      %p240 = scmp.eq.s32.totalorder %s36, 0
      %p241 = por %p239, %p240
      %s242 = ssub.s32 %s30, %s37
      %p243 = scmp.eq.s32.totalorder %s242, 0
      %s245 = sadd.s32 %s244, 1
      %s246 = scalar_select %p243, %s244, %s245
      %p249 = pneg %p243
      %p250 = scmp.eq.s32.totalorder %s30, 1
      %p251 = por %p249, %p250
      %p252 = scmp.ne.s32.totalorder %s244, %s247
      %p253 = scmp.eq.s32.totalorder %s30, 0
      %p254 = por %p252, %p253
      %p255 = scmp.ne.s32.totalorder %s244, %s247
      %p256 = scmp.eq.s32.totalorder %s35, 1
      %p257 = por %p255, %p256
      %p258 = scmp.ne.s32.totalorder %s247, %s248
      %p259 = scmp.eq.s32.totalorder %s35, 0
      %p260 = por %p258, %p259
      %p261 = scmp.ne.s32.totalorder %s247, %s248
      %p262 = scmp.eq.s32.totalorder %s36, 1
      %p263 = por %p261, %p262
      %p265 = scmp.ne.s32.totalorder %s248, %s264
      %p266 = scmp.eq.s32.totalorder %s36, 0
      %p267 = por %p265, %p266
      %s268 = ssub.s32 %s30, %s37
      %p269 = scmp.eq.s32.totalorder %s268, 0
      %s271 = sadd.s32 %s270, 1
      %s272 = scalar_select %p269, %s270, %s271
      %p275 = pneg %p269
      %p276 = scmp.eq.s32.totalorder %s30, 1
      %p277 = por %p275, %p276
      %p278 = scmp.ne.s32.totalorder %s270, %s273
      %p279 = scmp.eq.s32.totalorder %s30, 0
      %p280 = por %p278, %p279
      %p281 = scmp.ne.s32.totalorder %s270, %s273
      %p282 = scmp.eq.s32.totalorder %s35, 1
      %p283 = por %p281, %p282
      %p284 = scmp.ne.s32.totalorder %s273, %s274
      %p285 = scmp.eq.s32.totalorder %s35, 0
      %p286 = por %p284, %p285
      %p287 = scmp.ne.s32.totalorder %s273, %s274
      %p288 = scmp.eq.s32.totalorder %s36, 1
      %p289 = por %p287, %p288
      %p291 = scmp.ne.s32.totalorder %s274, %s290
      %p292 = scmp.eq.s32.totalorder %s36, 0
      %p293 = por %p291, %p292
      %s294 = ssub.s32 %s30, %s37
      %p295 = scmp.eq.s32.totalorder %s294, 0
      %s297 = sadd.s32 %s296, 1
      %s298 = scalar_select %p295, %s296, %s297
      %p301 = pneg %p295
      %p302 = scmp.eq.s32.totalorder %s30, 1
      %p303 = por %p301, %p302
      %p304 = scmp.ne.s32.totalorder %s296, %s299
      %p305 = scmp.eq.s32.totalorder %s30, 0
      %p306 = por %p304, %p305
      %p307 = scmp.ne.s32.totalorder %s296, %s299
      %p308 = scmp.eq.s32.totalorder %s35, 1
      %p309 = por %p307, %p308
      %p310 = scmp.ne.s32.totalorder %s299, %s300
      %p311 = scmp.eq.s32.totalorder %s35, 0
      %p312 = por %p310, %p311
      %p313 = scmp.ne.s32.totalorder %s299, %s300
      %p314 = scmp.eq.s32.totalorder %s36, 1
      %p315 = por %p313, %p314
      %p317 = scmp.ne.s32.totalorder %s300, %s316
      %p318 = scmp.eq.s32.totalorder %s36, 0
      %p319 = por %p317, %p318
      %p320 = scmp.le.s32.totalorder 1, %s30
      %p321 = scmp.lt.s32.totalorder %s30, 3
      %p322 = pnand %p320, %p321
      %p323 = pneg %p322
      // Predicated region
      $region9: #{tpu_custom_call.1} parent=5 // pred_check
        _
      $region10: #{tpu_custom_call.1} parent=5 // pred_check_branch
        %325 = sbr.rel (%p322) target = $region12
      $region11: #{tpu_custom_call.1} parent=5 // pred_region
        %s326 = ssub.s32 %s30, 1
        // Predicated region
        $region13: #{tpu_custom_call.1} parent=11 // pred_check
          %p327 = pneg %p77
        $region14: #{tpu_custom_call.1} parent=11 // pred_check_branch
          %329 = sbr.rel (%p327) target = $region16
        $region15: #{tpu_custom_call.1} parent=11 // pred_region
          _
        $region16: #{tpu_custom_call.1} parent=11 // pred_fallthru
          _
        // Predicated region
        $region17: #{tpu_custom_call.1} parent=11 // pred_check
          %p330 = pneg %p98
        $region18: #{tpu_custom_call.1} parent=11 // pred_check_branch
          %332 = sbr.rel (%p330) target = $region20
        $region19: #{tpu_custom_call.1} parent=11 // pred_region
          _
        $region20: #{tpu_custom_call.1} parent=11 // pred_fallthru
          _
        // Predicated region
        $region21: #{tpu_custom_call.1} parent=11 // pred_check
          %p333 = pneg %p119
        $region22: #{tpu_custom_call.1} parent=11 // pred_check_branch
          %335 = sbr.rel (%p333) target = $region24
        $region23: #{tpu_custom_call.1} parent=11 // pred_region
          _
        $region24: #{tpu_custom_call.1} parent=11 // pred_fallthru
          _
        // Predicated region
        $region25: #{tpu_custom_call.1} parent=11 // pred_check
          %p336 = pneg %p140
        $region26: #{tpu_custom_call.1} parent=11 // pred_check_branch
          %338 = sbr.rel (%p336) target = $region28
        $region27: #{tpu_custom_call.1} parent=11 // pred_region
          _
        $region28: #{tpu_custom_call.1} parent=11 // pred_fallthru
          _
        // Predicated region
        $region29: #{tpu_custom_call.1} parent=11 // pred_check
          %p339 = pneg %p161
        $region30: #{tpu_custom_call.1} parent=11 // pred_check_branch
          %341 = sbr.rel (%p339) target = $region32
        $region31: #{tpu_custom_call.1} parent=11 // pred_region
          _
        $region32: #{tpu_custom_call.1} parent=11 // pred_fallthru
          _
        // Predicated region
        $region33: #{tpu_custom_call.1} parent=11 // pred_check
          %p342 = pneg %p182
        $region34: #{tpu_custom_call.1} parent=11 // pred_check_branch
          %344 = sbr.rel (%p342) target = $region36
        $region35: #{tpu_custom_call.1} parent=11 // pred_region
          _
        $region36: #{tpu_custom_call.1} parent=11 // pred_fallthru
          _
      $region12: #{tpu_custom_call.1} parent=5 // pred_fallthru
        _
      %p345 = scmp.lt.s32.totalorder %s30, 2
      // Predicated region
      $region37: #{tpu_custom_call.1} parent=5 // pred_check
        %p346 = pneg %p345
      $region38: #{tpu_custom_call.1} parent=5 // pred_check_branch
        %348 = sbr.rel (%p346) target = $region40
      $region39: #{tpu_custom_call.1} parent=5 // pred_region
        // Predicated region
        $region41: #{tpu_custom_call.1} parent=39 // pred_check
          %p349 = pneg %p50
        $region42: #{tpu_custom_call.1} parent=39 // pred_check_branch
          %351 = sbr.rel (%p349) target = $region44
        $region43: #{tpu_custom_call.1} parent=39 // pred_region
          %s352 = sand.u32 %s40, 1
          %s353 = scalar_lea.sflag [#allocation3], %s352
          %s354 = sand.u32 %s40, 1
          %s355 = smul.addr %s354, 64
          %s356 = scalar_lea.vmem [#allocation2], %s355
          %358 = vsyncadd %s353, 0
          %s359 = smul.addr %s30, 8
          %s360 = scalar_lea.hbm %s0, %s359
          %s361 = sshll.u32 %s360, 4
          %s362 = int_to_ptr.hbm [resolvable:$true] %s361
          %s363 = sshll.u32 %s356, 4
          %s364 = int_to_ptr.vmem [resolvable:$true] %s363
          %369 = dma.hbm_to_vmem [thread:$0]  %s362, 1024, %s364, %s353, 256, 128, 8
        $region44: #{tpu_custom_call.1} parent=39 // pred_fallthru
          _
        // Predicated region
        $region45: #{tpu_custom_call.1} parent=39 // pred_check
          %p370 = pneg %p202
        $region46: #{tpu_custom_call.1} parent=39 // pred_check_branch
          %372 = sbr.rel (%p370) target = $region48
        $region47: #{tpu_custom_call.1} parent=39 // pred_region
          %s373 = sand.u32 %s30, 1
          %s374 = scalar_lea.sflag [#allocation6], %s373
          %s375 = sand.u32 %s192, 1
          %s376 = smul.addr %s375, 64
          %s377 = scalar_lea.vmem [#allocation5], %s376
          %379 = vsyncadd %s374, 0
          %s380 = smul.addr %s30, 8
          %s381 = scalar_lea.hbm %s7, %s380
          %s382 = sshll.u32 %s381, 4
          %s383 = int_to_ptr.hbm [resolvable:$true] %s382
          %s384 = sshll.u32 %s377, 4
          %s385 = int_to_ptr.vmem [resolvable:$true] %s384
          %390 = dma.hbm_to_vmem [thread:$0]  %s383, 1024, %s385, %s374, 256, 128, 8
        $region48: #{tpu_custom_call.1} parent=39 // pred_fallthru
          _
        // Predicated region
        $region49: #{tpu_custom_call.1} parent=39 // pred_check
          %p391 = pneg %p228
        $region50: #{tpu_custom_call.1} parent=39 // pred_check_branch
          %393 = sbr.rel (%p391) target = $region52
        $region51: #{tpu_custom_call.1} parent=39 // pred_region
          %s394 = sand.u32 %s30, 1
          %s395 = scalar_lea.sflag [#allocation6], %s394
          %s396 = sand.u32 %s218, 1
          %s397 = smul.addr %s396, 64
          %s398 = scalar_lea.vmem [#allocation7], %s397
          %400 = vsyncadd %s395, 0
          %s401 = smul.addr %s30, 8
          %s402 = scalar_lea.hbm %s8, %s401
          %s403 = sshll.u32 %s402, 4
          %s404 = int_to_ptr.hbm [resolvable:$true] %s403
          %s405 = sshll.u32 %s398, 4
          %s406 = int_to_ptr.vmem [resolvable:$true] %s405
          %411 = dma.hbm_to_vmem [thread:$0]  %s404, 1024, %s406, %s395, 256, 128, 8
        $region52: #{tpu_custom_call.1} parent=39 // pred_fallthru
          _
      $region40: #{tpu_custom_call.1} parent=5 // pred_fallthru
        _
      %p412 = scmp.le.s32.totalorder 1, %s30
      %p413 = scmp.lt.s32.totalorder %s30, 3
      %p414 = pnand %p412, %p413
      %p415 = pneg %p414
      // Predicated region
      $region53: #{tpu_custom_call.1} parent=5 // pred_check
        _
      $region54: #{tpu_custom_call.1} parent=5 // pred_check_branch
        %417 = sbr.rel (%p414) target = $region56
      $region55: #{tpu_custom_call.1} parent=5 // pred_region
        %s418 = ssub.s32 %s30, 1
        %s419 = sand.u32 %s43, 1
        %s420 = scalar_lea.sflag [#allocation3], %s419
        %s421 = sand.u32 %s43, 1
        %s422 = smul.addr %s421, 64
        %s423 = scalar_lea.vmem [#allocation2], %s422
        // Predicated region
        $region57: #{tpu_custom_call.1} parent=55 // pred_check
          %p424 = pneg %p56
        $region58: #{tpu_custom_call.1} parent=55 // pred_check_branch
          %426 = sbr.rel (%p424) target = $region60
        $region59: #{tpu_custom_call.1} parent=55 // pred_region
          %428 = dma.done %s420, 1024
        $region60: #{tpu_custom_call.1} parent=55 // pred_fallthru
          _
        %s429 = sand.u32 %s35, 1
        %s430 = scalar_lea.sflag [#allocation6], %s429
        %s431 = sand.u32 %s195, 1
        %s432 = smul.addr %s431, 64
        %s433 = scalar_lea.vmem [#allocation5], %s432
        // Predicated region
        $region61: #{tpu_custom_call.1} parent=55 // pred_check
          %p434 = pneg %p208
        $region62: #{tpu_custom_call.1} parent=55 // pred_check_branch
          %436 = sbr.rel (%p434) target = $region64
        $region63: #{tpu_custom_call.1} parent=55 // pred_region
          %438 = dma.done %s430, 1024
        $region64: #{tpu_custom_call.1} parent=55 // pred_fallthru
          _
        %s439 = sand.u32 %s35, 1
        %s440 = scalar_lea.sflag [#allocation6], %s439
        %s441 = sand.u32 %s221, 1
        %s442 = smul.addr %s441, 64
        %s443 = scalar_lea.vmem [#allocation7], %s442
        // Predicated region
        $region65: #{tpu_custom_call.1} parent=55 // pred_check
          %p444 = pneg %p234
        $region66: #{tpu_custom_call.1} parent=55 // pred_check_branch
          %446 = sbr.rel (%p444) target = $region68
        $region67: #{tpu_custom_call.1} parent=55 // pred_region
          %448 = dma.done %s440, 1024
        $region68: #{tpu_custom_call.1} parent=55 // pred_fallthru
          _
        %s449 = sand.u32 %s43, 1
        %s450 = scalar_lea.sflag [#allocation3], %s449
        %s451 = sand.u32 %s43, 1
        %s452 = smul.addr %s451, 64
        %s453 = scalar_lea.vmem [#allocation2], %s452
        %p454 = pneg %p56
        %p455 = pneg %p53
        %p456 = pneg %p77
        %p457 = pneg %p74
        %p458 = pneg %p98
        %p459 = pneg %p95
        %p460 = pneg %p119
        %p461 = pneg %p116
        %p462 = pneg %p140
        %p463 = pneg %p137
        %p464 = pneg %p161
        %p465 = pneg %p158
        %p466 = pneg %p182
        %p467 = pneg %p179
        %s468 = sand.u32 %s35, 1
        %s469 = scalar_lea.sflag [#allocation6], %s468
        %s470 = sand.u32 %s195, 1
        %s471 = smul.addr %s470, 64
        %s472 = scalar_lea.vmem [#allocation5], %s471
        %p473 = pneg %p208
        %p474 = pneg %p205
        %s475 = sand.u32 %s35, 1
        %s476 = scalar_lea.sflag [#allocation6], %s475
        %s477 = sand.u32 %s221, 1
        %s478 = smul.addr %s477, 64
        %s479 = scalar_lea.vmem [#allocation7], %s478
        %p480 = pneg %p234
        %p481 = pneg %p231
        %p482 = pneg %p260
        %p483 = pneg %p257
        %s484 = sand.u32 %s247, 1
        %s485 = scalar_lea.sflag [#allocation4], %s484
        %s486 = sand.u32 %s247, 1
        %s487 = smul.addr %s486, 64
        %s488 = scalar_lea.vmem [#allocation8], %s487
        %p489 = pneg %p286
        %p490 = pneg %p283
        %s491 = sand.u32 %s35, 1
        %s492 = scalar_lea.sflag [#allocation10], %s491
        %s493 = sand.u32 %s273, 1
        %s494 = smul.addr %s493, 64
        %s495 = scalar_lea.vmem [#allocation9], %s494
        %p496 = pneg %p312
        %p497 = pneg %p309
        %s498 = sand.u32 %s35, 1
        %s499 = scalar_lea.sflag [#allocation10], %s498
        %s500 = sand.u32 %s299, 1
        %s501 = smul.addr %s500, 64
        %s502 = scalar_lea.vmem [#allocation11], %s501
        %v503 = vld [vmem:[%s1] sm:$0xff]
        %v504 = vld [vmem:[%s1 + $0x8] sm:$0xff]
        %v505 = vld [vmem:[%s2] sm:$0xff]
        %v506 = vld [vmem:[%s2 + $0x8] sm:$0xff]
        %v507 = vld [vmem:[%s2 + $0x10] sm:$0xff]
        %v508 = vld [vmem:[%s2 + $0x18] sm:$0xff]
        %v509 = vld [vmem:[%s3] sm:$0xff]
        %v510 = vld [vmem:[%s3 + $0x8] sm:$0xff]
        %v511 = vld [vmem:[%s3 + $0x10] sm:$0xff]
        %v512 = vld [vmem:[%s3 + $0x18] sm:$0xff]
        %v513 = vld [vmem:[%s4] sm:$0x1]
        %v514 = vld [vmem:[%s5] sm:$0x1]
        %v515 = vld [vmem:[%s6] sm:$0x1]
        %v516 = vld [vmem:[%s423] sm:$0xff]
        %v517 = vld [vmem:[%s423 + $0x8] sm:$0xff]
        %v518 = vld [vmem:[%s423 + $0x10] sm:$0xff]
        %v519 = vld [vmem:[%s423 + $0x18] sm:$0xff]
        %v520 = vld [vmem:[%s423 + $0x20] sm:$0xff]
        %v521 = vld [vmem:[%s423 + $0x28] sm:$0xff]
        %v522 = vld [vmem:[%s423 + $0x30] sm:$0xff]
        %v523 = vld [vmem:[%s423 + $0x38] sm:$0xff]
        %vm524 = vcmask 130048
        %v526 = vsel %vm524, %v516, 0
        %v529 = vsel %vm524, %v517, 0
        %v532 = vsel %vm524, %v518, 0
        %v535 = vsel %vm524, %v519, 0
        %v538 = vsel %vm524, %v520, 0
        %v541 = vsel %vm524, %v521, 0
        %v544 = vsel %vm524, %v522, 0
        %v547 = vsel %vm524, %v523, 0
        %549 = vmatpush.msra.mxu0 0.0
        %550 = vmatpush.msra.mxu0 0.0
        %551 = vmatpush.msra.mxu0 0.0
        %552 = vmatpush.msra.mxu0 0.0
        %553 = vmatpush.msra.mxu0 0.0
        %554 = vmatpush.msra.mxu0 0.0
        %555 = vmatpush.msra.mxu0 0.0
        %556 = vmatpush.msra.mxu0 0.0
        %557 = vmatpush.msra.mxu0 0.0
        %558 = vmatpush.msra.mxu0 0.0
        %559 = vmatpush.msra.mxu0 0.0
        %560 = vmatpush.msra.mxu0 0.0
        %561 = vmatpush.msra.mxu0 0.0
        %562 = vmatpush.msra.mxu0 0.0
        %563 = vmatpush.msra.mxu0 %v504
        %564 = vmatpush.msra.mxu0 %v503
        %565 = vmatmul.f32.gmra.mxu0 %v526
        %v566 = vpop.f32.mrf.mxu0
        %v567 = vadd.f32 0.0, %v566
        %568 = vmatmul.f32.gmra.mxu0 %v529
        %v569 = vpop.f32.mrf.mxu0
        %v570 = vadd.f32 0.0, %v569
        %571 = vmatmul.f32.gmra.mxu0 %v532
        %v572 = vpop.f32.mrf.mxu0
        %v573 = vadd.f32 0.0, %v572
        %574 = vmatmul.f32.gmra.mxu0 %v535
        %v575 = vpop.f32.mrf.mxu0
        %v576 = vadd.f32 0.0, %v575
        %577 = vmatmul.f32.gmra.mxu0 %v538
        %v578 = vpop.f32.mrf.mxu0
        %v579 = vadd.f32 0.0, %v578
        %580 = vmatmul.f32.gmra.mxu0 %v541
        %v581 = vpop.f32.mrf.mxu0
        %v582 = vadd.f32 0.0, %v581
        %583 = vmatmul.f32.gmra.mxu0 %v544
        %v584 = vpop.f32.mrf.mxu0
        %v585 = vadd.f32 0.0, %v584
        %586 = vmatmul.f32.gmra.mxu0 %v547
        %v587 = vpop.f32.mrf.mxu0
        %v588 = vadd.f32 0.0, %v587
        %589 = vdwg.mxu0
        %vm590 = vcmask 261120
        %591 = vst.msk [vmem:[%s495] sm:$0xff] %vm590, %v567
        %592 = vst.msk [vmem:[%s495 + $0x8] sm:$0xff] %vm590, %v570
        %593 = vst.msk [vmem:[%s495 + $0x10] sm:$0xff] %vm590, %v573
        %594 = vst.msk [vmem:[%s495 + $0x18] sm:$0xff] %vm590, %v576
        %595 = vst.msk [vmem:[%s495 + $0x20] sm:$0xff] %vm590, %v579
        %596 = vst.msk [vmem:[%s495 + $0x28] sm:$0xff] %vm590, %v582
        %597 = vst.msk [vmem:[%s495 + $0x30] sm:$0xff] %vm590, %v585
        %598 = vst.msk [vmem:[%s495 + $0x38] sm:$0xff] %vm590, %v588
        %v599 = vld [vmem:[%s495] sm:$0xff]
        %v601 = vperm.slane %v514, 0
        %v603 = vadd.f32 %v599, %v601
        %v604 = vxor.u32 %v603, 2147483648
        %v605 = vmul.f32 %v604, 1.442695
        %v606 = vpow.pop %v605
        %v607 = vadd.f32 %v606, 1.0
        %v608 = vrcp.pop %v607
        %v609 = vmul.f32 %v607, %v608
        %v610 = vsub.f32 1.0, %v609
        %v611 = vmul.f32 %v608, %v610
        %v612 = vadd.f32 %v608, %v611
        %vm613 = vweird.f32 %v607
        %vm614 = vweird.f32 %v608
        %vm615 = vmor %vm613, %vm614
        %v616 = vsel %vm615, %v608, %v612
        %v617 = vand.u32 2147483647, %v607
        %vm618 = vcmp.eq.f32.partialorder %v617, 8.507059e+37
        %v619 = vand.u32 %v607, 2147483648
        %v620 = vor.u32 1.1754944e-38, %v619
        %v621 = vsel %vm618, %v620, %v616
        %v622 = vmul.f32 1.0, %v621
        %623 = vst.msk [vmem:[%s495] sm:$0xff] %vm590, %v622
        %s624 = scalar_lea.vmem %s495, 8 [#allocation9]
        %v625 = vld [vmem:[%s624] sm:$0xff]
        %v627 = vsel %vm590, %v622, 0
        %629 = vmatpush.msra.mxu0 0.0
        %630 = vmatpush.msra.mxu0 0.0
        %631 = vmatpush.msra.mxu0 0.0
        %632 = vmatpush.msra.mxu0 0.0
        %633 = vmatpush.msra.mxu0 0.0
        %634 = vmatpush.msra.mxu0 0.0
        %635 = vmatpush.msra.mxu0 0.0
        %636 = vmatpush.msra.mxu0 0.0
        %637 = vmatpush.msra.mxu0 0.0
        %638 = vmatpush.msra.mxu0 0.0
        %639 = vmatpush.msra.mxu0 0.0
        %640 = vmatpush.msra.mxu0 0.0
        %641 = vmatpush.msra.mxu0 %v508
        %642 = vmatpush.msra.mxu0 %v507
        %643 = vmatpush.msra.mxu0 %v506
        %644 = vmatpush.msra.mxu0 %v505
        %645 = vmatmul.f32.gmra.mxu0 %v627
        %v646 = vpop.f32.mrf.mxu0
        %v647 = vadd.f32 0.0, %v646
        %648 = vdwg.mxu0
        %v649 = vadd.f32 %v625, %v647
        %v651 = vperm.slane %v513, 0
        %v653 = vadd.f32 %v649, %v651
        %v654 = vxor.u32 %v653, 2147483648
        %v655 = vmul.f32 %v654, 1.442695
        %v656 = vpow.pop %v655
        %v657 = vadd.f32 %v656, 1.0
        %v658 = vrcp.pop %v657
        %v659 = vmul.f32 %v657, %v658
        %v660 = vsub.f32 1.0, %v659
        %v661 = vmul.f32 %v658, %v660
        %v662 = vadd.f32 %v658, %v661
        %vm663 = vweird.f32 %v657
        %vm664 = vweird.f32 %v658
        %vm665 = vmor %vm663, %vm664
        %v666 = vsel %vm665, %v658, %v662
        %v667 = vand.u32 2147483647, %v657
        %vm668 = vcmp.eq.f32.partialorder %v667, 8.507059e+37
        %v669 = vand.u32 %v657, 2147483648
        %v670 = vor.u32 1.1754944e-38, %v669
        %v671 = vsel %vm668, %v670, %v666
        %v672 = vmul.f32 1.0, %v671
        %673 = vst.msk [vmem:[%s624] sm:$0xff] %vm590, %v672
        %s674 = scalar_lea.vmem %s495, 16 [#allocation9]
        %v675 = vld [vmem:[%s674] sm:$0xff]
        %v677 = vsel %vm590, %v672, 0
        %679 = vmatpush.msra.mxu0 0.0
        %680 = vmatpush.msra.mxu0 0.0
        %681 = vmatpush.msra.mxu0 0.0
        %682 = vmatpush.msra.mxu0 0.0
        %683 = vmatpush.msra.mxu0 0.0
        %684 = vmatpush.msra.mxu0 0.0
        %685 = vmatpush.msra.mxu0 0.0
        %686 = vmatpush.msra.mxu0 0.0
        %687 = vmatpush.msra.mxu0 0.0
        %688 = vmatpush.msra.mxu0 0.0
        %689 = vmatpush.msra.mxu0 0.0
        %690 = vmatpush.msra.mxu0 0.0
        %691 = vmatpush.msra.mxu0 %v508
        %692 = vmatpush.msra.mxu0 %v507
        %693 = vmatpush.msra.mxu0 %v506
        %694 = vmatpush.msra.mxu0 %v505
        %695 = vmatmul.f32.gmra.mxu0 %v677
        %v696 = vpop.f32.mrf.mxu0
        %v697 = vadd.f32 0.0, %v696
        %698 = vdwg.mxu0
        %v699 = vadd.f32 %v675, %v697
        %v700 = vadd.f32 %v699, %v651
        %v701 = vxor.u32 %v700, 2147483648
        %v702 = vmul.f32 %v701, 1.442695
        %v703 = vpow.pop %v702
        %v704 = vadd.f32 %v703, 1.0
        %v705 = vrcp.pop %v704
        %v706 = vmul.f32 %v704, %v705
        %v707 = vsub.f32 1.0, %v706
        %v708 = vmul.f32 %v705, %v707
        %v709 = vadd.f32 %v705, %v708
        %vm710 = vweird.f32 %v704
        %vm711 = vweird.f32 %v705
        %vm712 = vmor %vm710, %vm711
        %v713 = vsel %vm712, %v705, %v709
        %v714 = vand.u32 2147483647, %v704
        %vm715 = vcmp.eq.f32.partialorder %v714, 8.507059e+37
        %v716 = vand.u32 %v704, 2147483648
        %v717 = vor.u32 1.1754944e-38, %v716
        %v718 = vsel %vm715, %v717, %v713
        %v719 = vmul.f32 1.0, %v718
        %720 = vst.msk [vmem:[%s674] sm:$0xff] %vm590, %v719
        %s721 = scalar_lea.vmem %s495, 24 [#allocation9]
        %v722 = vld [vmem:[%s721] sm:$0xff]
        %v724 = vsel %vm590, %v719, 0
        %726 = vmatpush.msra.mxu0 0.0
        %727 = vmatpush.msra.mxu0 0.0
        %728 = vmatpush.msra.mxu0 0.0
        %729 = vmatpush.msra.mxu0 0.0
        %730 = vmatpush.msra.mxu0 0.0
        %731 = vmatpush.msra.mxu0 0.0
        %732 = vmatpush.msra.mxu0 0.0
        %733 = vmatpush.msra.mxu0 0.0
        %734 = vmatpush.msra.mxu0 0.0
        %735 = vmatpush.msra.mxu0 0.0
        %736 = vmatpush.msra.mxu0 0.0
        %737 = vmatpush.msra.mxu0 0.0
        %738 = vmatpush.msra.mxu0 %v508
        %739 = vmatpush.msra.mxu0 %v507
        %740 = vmatpush.msra.mxu0 %v506
        %741 = vmatpush.msra.mxu0 %v505
        %742 = vmatmul.f32.gmra.mxu0 %v724
        %v743 = vpop.f32.mrf.mxu0
        %v744 = vadd.f32 0.0, %v743
        %745 = vdwg.mxu0
        %v746 = vadd.f32 %v722, %v744
        %v747 = vadd.f32 %v746, %v651
        %v748 = vxor.u32 %v747, 2147483648
        %v749 = vmul.f32 %v748, 1.442695
        %v750 = vpow.pop %v749
        %v751 = vadd.f32 %v750, 1.0
        %v752 = vrcp.pop %v751
        %v753 = vmul.f32 %v751, %v752
        %v754 = vsub.f32 1.0, %v753
        %v755 = vmul.f32 %v752, %v754
        %v756 = vadd.f32 %v752, %v755
        %vm757 = vweird.f32 %v751
        %vm758 = vweird.f32 %v752
        %vm759 = vmor %vm757, %vm758
        %v760 = vsel %vm759, %v752, %v756
        %v761 = vand.u32 2147483647, %v751
        %vm762 = vcmp.eq.f32.partialorder %v761, 8.507059e+37
        %v763 = vand.u32 %v751, 2147483648
        %v764 = vor.u32 1.1754944e-38, %v763
        %v765 = vsel %vm762, %v764, %v760
        %v766 = vmul.f32 1.0, %v765
        %767 = vst.msk [vmem:[%s721] sm:$0xff] %vm590, %v766
        %s768 = scalar_lea.vmem %s495, 32 [#allocation9]
        %v769 = vld [vmem:[%s768] sm:$0xff]
        %v771 = vsel %vm590, %v766, 0
        %773 = vmatpush.msra.mxu0 0.0
        %774 = vmatpush.msra.mxu0 0.0
        %775 = vmatpush.msra.mxu0 0.0
        %776 = vmatpush.msra.mxu0 0.0
        %777 = vmatpush.msra.mxu0 0.0
        %778 = vmatpush.msra.mxu0 0.0
        %779 = vmatpush.msra.mxu0 0.0
        %780 = vmatpush.msra.mxu0 0.0
        %781 = vmatpush.msra.mxu0 0.0
        %782 = vmatpush.msra.mxu0 0.0
        %783 = vmatpush.msra.mxu0 0.0
        %784 = vmatpush.msra.mxu0 0.0
        %785 = vmatpush.msra.mxu0 %v508
        %786 = vmatpush.msra.mxu0 %v507
        %787 = vmatpush.msra.mxu0 %v506
        %788 = vmatpush.msra.mxu0 %v505
        %789 = vmatmul.f32.gmra.mxu0 %v771
        %v790 = vpop.f32.mrf.mxu0
        %v791 = vadd.f32 0.0, %v790
        %792 = vdwg.mxu0
        %v793 = vadd.f32 %v769, %v791
        %v794 = vadd.f32 %v793, %v651
        %v795 = vxor.u32 %v794, 2147483648
        %v796 = vmul.f32 %v795, 1.442695
        %v797 = vpow.pop %v796
        %v798 = vadd.f32 %v797, 1.0
        %v799 = vrcp.pop %v798
        %v800 = vmul.f32 %v798, %v799
        %v801 = vsub.f32 1.0, %v800
        %v802 = vmul.f32 %v799, %v801
        %v803 = vadd.f32 %v799, %v802
        %vm804 = vweird.f32 %v798
        %vm805 = vweird.f32 %v799
        %vm806 = vmor %vm804, %vm805
        %v807 = vsel %vm806, %v799, %v803
        %v808 = vand.u32 2147483647, %v798
        %vm809 = vcmp.eq.f32.partialorder %v808, 8.507059e+37
        %v810 = vand.u32 %v798, 2147483648
        %v811 = vor.u32 1.1754944e-38, %v810
        %v812 = vsel %vm809, %v811, %v807
        %v813 = vmul.f32 1.0, %v812
        %814 = vst.msk [vmem:[%s768] sm:$0xff] %vm590, %v813
        %s815 = scalar_lea.vmem %s495, 40 [#allocation9]
        %v816 = vld [vmem:[%s815] sm:$0xff]
        %v818 = vsel %vm590, %v813, 0
        %820 = vmatpush.msra.mxu0 0.0
        %821 = vmatpush.msra.mxu0 0.0
        %822 = vmatpush.msra.mxu0 0.0
        %823 = vmatpush.msra.mxu0 0.0
        %824 = vmatpush.msra.mxu0 0.0
        %825 = vmatpush.msra.mxu0 0.0
        %826 = vmatpush.msra.mxu0 0.0
        %827 = vmatpush.msra.mxu0 0.0
        %828 = vmatpush.msra.mxu0 0.0
        %829 = vmatpush.msra.mxu0 0.0
        %830 = vmatpush.msra.mxu0 0.0
        %831 = vmatpush.msra.mxu0 0.0
        %832 = vmatpush.msra.mxu0 %v508
        %833 = vmatpush.msra.mxu0 %v507
        %834 = vmatpush.msra.mxu0 %v506
        %835 = vmatpush.msra.mxu0 %v505
        %836 = vmatmul.f32.gmra.mxu0 %v818
        %v837 = vpop.f32.mrf.mxu0
        %v838 = vadd.f32 0.0, %v837
        %839 = vdwg.mxu0
        %v840 = vadd.f32 %v816, %v838
        %v841 = vadd.f32 %v840, %v651
        %v842 = vxor.u32 %v841, 2147483648
        %v843 = vmul.f32 %v842, 1.442695
        %v844 = vpow.pop %v843
        %v845 = vadd.f32 %v844, 1.0
        %v846 = vrcp.pop %v845
        %v847 = vmul.f32 %v845, %v846
        %v848 = vsub.f32 1.0, %v847
        %v849 = vmul.f32 %v846, %v848
        %v850 = vadd.f32 %v846, %v849
        %vm851 = vweird.f32 %v845
        %vm852 = vweird.f32 %v846
        %vm853 = vmor %vm851, %vm852
        %v854 = vsel %vm853, %v846, %v850
        %v855 = vand.u32 2147483647, %v845
        %vm856 = vcmp.eq.f32.partialorder %v855, 8.507059e+37
        %v857 = vand.u32 %v845, 2147483648
        %v858 = vor.u32 1.1754944e-38, %v857
        %v859 = vsel %vm856, %v858, %v854
        %v860 = vmul.f32 1.0, %v859
        %861 = vst.msk [vmem:[%s815] sm:$0xff] %vm590, %v860
        %s862 = scalar_lea.vmem %s495, 48 [#allocation9]
        %v863 = vld [vmem:[%s862] sm:$0xff]
        %v865 = vsel %vm590, %v860, 0
        %867 = vmatpush.msra.mxu0 0.0
        %868 = vmatpush.msra.mxu0 0.0
        %869 = vmatpush.msra.mxu0 0.0
        %870 = vmatpush.msra.mxu0 0.0
        %871 = vmatpush.msra.mxu0 0.0
        %872 = vmatpush.msra.mxu0 0.0
        %873 = vmatpush.msra.mxu0 0.0
        %874 = vmatpush.msra.mxu0 0.0
        %875 = vmatpush.msra.mxu0 0.0
        %876 = vmatpush.msra.mxu0 0.0
        %877 = vmatpush.msra.mxu0 0.0
        %878 = vmatpush.msra.mxu0 0.0
        %879 = vmatpush.msra.mxu0 %v508
        %880 = vmatpush.msra.mxu0 %v507
        %881 = vmatpush.msra.mxu0 %v506
        %882 = vmatpush.msra.mxu0 %v505
        %883 = vmatmul.f32.gmra.mxu0 %v865
        %v884 = vpop.f32.mrf.mxu0
        %v885 = vadd.f32 0.0, %v884
        %886 = vdwg.mxu0
        %v887 = vadd.f32 %v863, %v885
        %v888 = vadd.f32 %v887, %v651
        %v889 = vxor.u32 %v888, 2147483648
        %v890 = vmul.f32 %v889, 1.442695
        %v891 = vpow.pop %v890
        %v892 = vadd.f32 %v891, 1.0
        %v893 = vrcp.pop %v892
        %v894 = vmul.f32 %v892, %v893
        %v895 = vsub.f32 1.0, %v894
        %v896 = vmul.f32 %v893, %v895
        %v897 = vadd.f32 %v893, %v896
        %vm898 = vweird.f32 %v892
        %vm899 = vweird.f32 %v893
        %vm900 = vmor %vm898, %vm899
        %v901 = vsel %vm900, %v893, %v897
        %v902 = vand.u32 2147483647, %v892
        %vm903 = vcmp.eq.f32.partialorder %v902, 8.507059e+37
        %v904 = vand.u32 %v892, 2147483648
        %v905 = vor.u32 1.1754944e-38, %v904
        %v906 = vsel %vm903, %v905, %v901
        %v907 = vmul.f32 1.0, %v906
        %908 = vst.msk [vmem:[%s862] sm:$0xff] %vm590, %v907
        %s909 = scalar_lea.vmem %s495, 56 [#allocation9]
        %v910 = vld [vmem:[%s909] sm:$0xff]
        %v912 = vsel %vm590, %v907, 0
        %914 = vmatpush.msra.mxu0 0.0
        %915 = vmatpush.msra.mxu0 0.0
        %916 = vmatpush.msra.mxu0 0.0
        %917 = vmatpush.msra.mxu0 0.0
        %918 = vmatpush.msra.mxu0 0.0
        %919 = vmatpush.msra.mxu0 0.0
        %920 = vmatpush.msra.mxu0 0.0
        %921 = vmatpush.msra.mxu0 0.0
        %922 = vmatpush.msra.mxu0 0.0
        %923 = vmatpush.msra.mxu0 0.0
        %924 = vmatpush.msra.mxu0 0.0
        %925 = vmatpush.msra.mxu0 0.0
        %926 = vmatpush.msra.mxu0 %v508
        %927 = vmatpush.msra.mxu0 %v507
        %928 = vmatpush.msra.mxu0 %v506
        %929 = vmatpush.msra.mxu0 %v505
        %930 = vmatmul.f32.gmra.mxu0 %v912
        %v931 = vpop.f32.mrf.mxu0
        %v932 = vadd.f32 0.0, %v931
        %933 = vdwg.mxu0
        %v934 = vadd.f32 %v910, %v932
        %v935 = vadd.f32 %v934, %v651
        %v936 = vxor.u32 %v935, 2147483648
        %v937 = vmul.f32 %v936, 1.442695
        %v938 = vpow.pop %v937
        %v939 = vadd.f32 %v938, 1.0
        %v940 = vrcp.pop %v939
        %v941 = vmul.f32 %v939, %v940
        %v942 = vsub.f32 1.0, %v941
        %v943 = vmul.f32 %v940, %v942
        %v944 = vadd.f32 %v940, %v943
        %vm945 = vweird.f32 %v939
        %vm946 = vweird.f32 %v940
        %vm947 = vmor %vm945, %vm946
        %v948 = vsel %vm947, %v940, %v944
        %v949 = vand.u32 2147483647, %v939
        %vm950 = vcmp.eq.f32.partialorder %v949, 8.507059e+37
        %v951 = vand.u32 %v939, 2147483648
        %v952 = vor.u32 1.1754944e-38, %v951
        %v953 = vsel %vm950, %v952, %v948
        %v954 = vmul.f32 1.0, %v953
        %955 = vst.msk [vmem:[%s909] sm:$0xff] %vm590, %v954
        %v956 = vld [vmem:[%s495] sm:$0xff]
        %v957 = vld [vmem:[%s495 + $0x8] sm:$0xff]
        %v958 = vld [vmem:[%s495 + $0x10] sm:$0xff]
        %v959 = vld [vmem:[%s495 + $0x18] sm:$0xff]
        %v960 = vld [vmem:[%s495 + $0x20] sm:$0xff]
        %v961 = vld [vmem:[%s495 + $0x28] sm:$0xff]
        %v962 = vld [vmem:[%s495 + $0x30] sm:$0xff]
        %v963 = vld [vmem:[%s495 + $0x38] sm:$0xff]
        %v964 = vld [vmem:[%s433] sm:$0xff]
        %v965 = vld [vmem:[%s433 + $0x8] sm:$0xff]
        %v966 = vld [vmem:[%s433 + $0x10] sm:$0xff]
        %v967 = vld [vmem:[%s433 + $0x18] sm:$0xff]
        %v968 = vld [vmem:[%s433 + $0x20] sm:$0xff]
        %v969 = vld [vmem:[%s433 + $0x28] sm:$0xff]
        %v970 = vld [vmem:[%s433 + $0x30] sm:$0xff]
        %v971 = vld [vmem:[%s433 + $0x38] sm:$0xff]
        %vm972 = vcmp.lt.f32.partialorder %v964, %v956
        %vm973 = vcmp.lt.f32.partialorder %v965, %v957
        %vm974 = vcmp.lt.f32.partialorder %v966, %v958
        %vm975 = vcmp.lt.f32.partialorder %v967, %v959
        %vm976 = vcmp.lt.f32.partialorder %v968, %v960
        %vm977 = vcmp.lt.f32.partialorder %v969, %v961
        %vm978 = vcmp.lt.f32.partialorder %v970, %v962
        %vm979 = vcmp.lt.f32.partialorder %v971, %v963
        %v980 = vsel %vm972, 1, 0
        %v981 = vsel %vm973, 1, 0
        %v982 = vsel %vm974, 1, 0
        %v983 = vsel %vm975, 1, 0
        %v984 = vsel %vm976, 1, 0
        %v985 = vsel %vm977, 1, 0
        %v986 = vsel %vm978, 1, 0
        %v987 = vsel %vm979, 1, 0
        %v988 = vcvt.s32.f32 %v980
        %v989 = vcvt.s32.f32 %v981
        %v990 = vcvt.s32.f32 %v982
        %v991 = vcvt.s32.f32 %v983
        %v992 = vcvt.s32.f32 %v984
        %v993 = vcvt.s32.f32 %v985
        %v994 = vcvt.s32.f32 %v986
        %v995 = vcvt.s32.f32 %v987
        %v997 = vperm.slane %v515, 0
        %v1000 = vsel %vm590, %v988, 0
        %v1003 = vsel %vm590, %v989, 0
        %v1006 = vsel %vm590, %v990, 0
        %v1009 = vsel %vm590, %v991, 0
        %v1012 = vsel %vm590, %v992, 0
        %v1015 = vsel %vm590, %v993, 0
        %v1018 = vsel %vm590, %v994, 0
        %v1021 = vsel %vm590, %v995, 0
        %1023 = vmatpush.msra.mxu0 0.0
        %1024 = vmatpush.msra.mxu0 0.0
        %1025 = vmatpush.msra.mxu0 0.0
        %1026 = vmatpush.msra.mxu0 0.0
        %1027 = vmatpush.msra.mxu0 0.0
        %1028 = vmatpush.msra.mxu0 0.0
        %1029 = vmatpush.msra.mxu0 0.0
        %1030 = vmatpush.msra.mxu0 0.0
        %1031 = vmatpush.msra.mxu0 0.0
        %1032 = vmatpush.msra.mxu0 0.0
        %1033 = vmatpush.msra.mxu0 0.0
        %1034 = vmatpush.msra.mxu0 0.0
        %1035 = vmatpush.msra.mxu0 %v512
        %1036 = vmatpush.msra.mxu0 %v511
        %1037 = vmatpush.msra.mxu0 %v510
        %1038 = vmatpush.msra.mxu0 %v509
        %1039 = vmatmul.f32.gmra.mxu0 %v1000
        %v1040 = vpop.f32.mrf.mxu0
        %v1041 = vadd.f32 %v997, %v1040
        %1042 = vmatmul.f32.gmra.mxu0 %v1003
        %v1043 = vpop.f32.mrf.mxu0
        %v1044 = vadd.f32 %v997, %v1043
        %1045 = vmatmul.f32.gmra.mxu0 %v1006
        %v1046 = vpop.f32.mrf.mxu0
        %v1047 = vadd.f32 %v997, %v1046
        %1048 = vmatmul.f32.gmra.mxu0 %v1009
        %v1049 = vpop.f32.mrf.mxu0
        %v1050 = vadd.f32 %v997, %v1049
        %1051 = vmatmul.f32.gmra.mxu0 %v1012
        %v1052 = vpop.f32.mrf.mxu0
        %v1053 = vadd.f32 %v997, %v1052
        %1054 = vmatmul.f32.gmra.mxu0 %v1015
        %v1055 = vpop.f32.mrf.mxu0
        %v1056 = vadd.f32 %v997, %v1055
        %1057 = vmatmul.f32.gmra.mxu0 %v1018
        %v1058 = vpop.f32.mrf.mxu0
        %v1059 = vadd.f32 %v997, %v1058
        %1060 = vmatmul.f32.gmra.mxu0 %v1021
        %v1061 = vpop.f32.mrf.mxu0
        %v1062 = vadd.f32 %v997, %v1061
        %1063 = vdwg.mxu0
        %v1064 = vxor.u32 %v1041, 2147483648
        %v1065 = vxor.u32 %v1044, 2147483648
        %v1066 = vxor.u32 %v1047, 2147483648
        %v1067 = vxor.u32 %v1050, 2147483648
        %v1068 = vxor.u32 %v1053, 2147483648
        %v1069 = vxor.u32 %v1056, 2147483648
        %v1070 = vxor.u32 %v1059, 2147483648
        %v1071 = vxor.u32 %v1062, 2147483648
        %v1072 = vmul.f32 %v1064, 1.442695
        %v1073 = vpow.pop %v1072
        %v1074 = vmul.f32 %v1065, 1.442695
        %v1075 = vpow.pop %v1074
        %v1076 = vmul.f32 %v1066, 1.442695
        %v1077 = vpow.pop %v1076
        %v1078 = vmul.f32 %v1067, 1.442695
        %v1079 = vpow.pop %v1078
        %v1080 = vmul.f32 %v1068, 1.442695
        %v1081 = vpow.pop %v1080
        %v1082 = vmul.f32 %v1069, 1.442695
        %v1083 = vpow.pop %v1082
        %v1084 = vmul.f32 %v1070, 1.442695
        %v1085 = vpow.pop %v1084
        %v1086 = vmul.f32 %v1071, 1.442695
        %v1087 = vpow.pop %v1086
        %v1088 = vadd.f32 %v1073, 1.0
        %v1089 = vadd.f32 %v1075, 1.0
        %v1090 = vadd.f32 %v1077, 1.0
        %v1091 = vadd.f32 %v1079, 1.0
        %v1092 = vadd.f32 %v1081, 1.0
        %v1093 = vadd.f32 %v1083, 1.0
        %v1094 = vadd.f32 %v1085, 1.0
        %v1095 = vadd.f32 %v1087, 1.0
        %v1096 = vrcp.pop %v1088
        %v1097 = vmul.f32 %v1088, %v1096
        %v1098 = vsub.f32 1.0, %v1097
        %v1099 = vmul.f32 %v1096, %v1098
        %v1100 = vadd.f32 %v1096, %v1099
        %vm1101 = vweird.f32 %v1088
        %vm1102 = vweird.f32 %v1096
        %vm1103 = vmor %vm1101, %vm1102
        %v1104 = vsel %vm1103, %v1096, %v1100
        %v1105 = vand.u32 2147483647, %v1088
        %vm1106 = vcmp.eq.f32.partialorder %v1105, 8.507059e+37
        %v1107 = vand.u32 %v1088, 2147483648
        %v1108 = vor.u32 1.1754944e-38, %v1107
        %v1109 = vsel %vm1106, %v1108, %v1104
        %v1110 = vmul.f32 1.0, %v1109
        %v1111 = vrcp.pop %v1089
        %v1112 = vmul.f32 %v1089, %v1111
        %v1113 = vsub.f32 1.0, %v1112
        %v1114 = vmul.f32 %v1111, %v1113
        %v1115 = vadd.f32 %v1111, %v1114
        %vm1116 = vweird.f32 %v1089
        %vm1117 = vweird.f32 %v1111
        %vm1118 = vmor %vm1116, %vm1117
        %v1119 = vsel %vm1118, %v1111, %v1115
        %v1120 = vand.u32 2147483647, %v1089
        %vm1121 = vcmp.eq.f32.partialorder %v1120, 8.507059e+37
        %v1122 = vand.u32 %v1089, 2147483648
        %v1123 = vor.u32 1.1754944e-38, %v1122
        %v1124 = vsel %vm1121, %v1123, %v1119
        %v1125 = vmul.f32 1.0, %v1124
        %v1126 = vrcp.pop %v1090
        %v1127 = vmul.f32 %v1090, %v1126
        %v1128 = vsub.f32 1.0, %v1127
        %v1129 = vmul.f32 %v1126, %v1128
        %v1130 = vadd.f32 %v1126, %v1129
        %vm1131 = vweird.f32 %v1090
        %vm1132 = vweird.f32 %v1126
        %vm1133 = vmor %vm1131, %vm1132
        %v1134 = vsel %vm1133, %v1126, %v1130
        %v1135 = vand.u32 2147483647, %v1090
        %vm1136 = vcmp.eq.f32.partialorder %v1135, 8.507059e+37
        %v1137 = vand.u32 %v1090, 2147483648
        %v1138 = vor.u32 1.1754944e-38, %v1137
        %v1139 = vsel %vm1136, %v1138, %v1134
        %v1140 = vmul.f32 1.0, %v1139
        %v1141 = vrcp.pop %v1091
        %v1142 = vmul.f32 %v1091, %v1141
        %v1143 = vsub.f32 1.0, %v1142
        %v1144 = vmul.f32 %v1141, %v1143
        %v1145 = vadd.f32 %v1141, %v1144
        %vm1146 = vweird.f32 %v1091
        %vm1147 = vweird.f32 %v1141
        %vm1148 = vmor %vm1146, %vm1147
        %v1149 = vsel %vm1148, %v1141, %v1145
        %v1150 = vand.u32 2147483647, %v1091
        %vm1151 = vcmp.eq.f32.partialorder %v1150, 8.507059e+37
        %v1152 = vand.u32 %v1091, 2147483648
        %v1153 = vor.u32 1.1754944e-38, %v1152
        %v1154 = vsel %vm1151, %v1153, %v1149
        %v1155 = vmul.f32 1.0, %v1154
        %v1156 = vrcp.pop %v1092
        %v1157 = vmul.f32 %v1092, %v1156
        %v1158 = vsub.f32 1.0, %v1157
        %v1159 = vmul.f32 %v1156, %v1158
        %v1160 = vadd.f32 %v1156, %v1159
        %vm1161 = vweird.f32 %v1092
        %vm1162 = vweird.f32 %v1156
        %vm1163 = vmor %vm1161, %vm1162
        %v1164 = vsel %vm1163, %v1156, %v1160
        %v1165 = vand.u32 2147483647, %v1092
        %vm1166 = vcmp.eq.f32.partialorder %v1165, 8.507059e+37
        %v1167 = vand.u32 %v1092, 2147483648
        %v1168 = vor.u32 1.1754944e-38, %v1167
        %v1169 = vsel %vm1166, %v1168, %v1164
        %v1170 = vmul.f32 1.0, %v1169
        %v1171 = vrcp.pop %v1093
        %v1172 = vmul.f32 %v1093, %v1171
        %v1173 = vsub.f32 1.0, %v1172
        %v1174 = vmul.f32 %v1171, %v1173
        %v1175 = vadd.f32 %v1171, %v1174
        %vm1176 = vweird.f32 %v1093
        %vm1177 = vweird.f32 %v1171
        %vm1178 = vmor %vm1176, %vm1177
        %v1179 = vsel %vm1178, %v1171, %v1175
        %v1180 = vand.u32 2147483647, %v1093
        %vm1181 = vcmp.eq.f32.partialorder %v1180, 8.507059e+37
        %v1182 = vand.u32 %v1093, 2147483648
        %v1183 = vor.u32 1.1754944e-38, %v1182
        %v1184 = vsel %vm1181, %v1183, %v1179
        %v1185 = vmul.f32 1.0, %v1184
        %v1186 = vrcp.pop %v1094
        %v1187 = vmul.f32 %v1094, %v1186
        %v1188 = vsub.f32 1.0, %v1187
        %v1189 = vmul.f32 %v1186, %v1188
        %v1190 = vadd.f32 %v1186, %v1189
        %vm1191 = vweird.f32 %v1094
        %vm1192 = vweird.f32 %v1186
        %vm1193 = vmor %vm1191, %vm1192
        %v1194 = vsel %vm1193, %v1186, %v1190
        %v1195 = vand.u32 2147483647, %v1094
        %vm1196 = vcmp.eq.f32.partialorder %v1195, 8.507059e+37
        %v1197 = vand.u32 %v1094, 2147483648
        %v1198 = vor.u32 1.1754944e-38, %v1197
        %v1199 = vsel %vm1196, %v1198, %v1194
        %v1200 = vmul.f32 1.0, %v1199
        %v1201 = vrcp.pop %v1095
        %v1202 = vmul.f32 %v1095, %v1201
        %v1203 = vsub.f32 1.0, %v1202
        %v1204 = vmul.f32 %v1201, %v1203
        %v1205 = vadd.f32 %v1201, %v1204
        %vm1206 = vweird.f32 %v1095
        %vm1207 = vweird.f32 %v1201
        %vm1208 = vmor %vm1206, %vm1207
        %v1209 = vsel %vm1208, %v1201, %v1205
        %v1210 = vand.u32 2147483647, %v1095
        %vm1211 = vcmp.eq.f32.partialorder %v1210, 8.507059e+37
        %v1212 = vand.u32 %v1095, 2147483648
        %v1213 = vor.u32 1.1754944e-38, %v1212
        %v1214 = vsel %vm1211, %v1213, %v1209
        %v1215 = vmul.f32 1.0, %v1214
        %v1216 = vld [vmem:[%s443] sm:$0xff]
        %v1217 = vld [vmem:[%s443 + $0x8] sm:$0xff]
        %v1218 = vld [vmem:[%s443 + $0x10] sm:$0xff]
        %v1219 = vld [vmem:[%s443 + $0x18] sm:$0xff]
        %v1220 = vld [vmem:[%s443 + $0x20] sm:$0xff]
        %v1221 = vld [vmem:[%s443 + $0x28] sm:$0xff]
        %v1222 = vld [vmem:[%s443 + $0x30] sm:$0xff]
        %v1223 = vld [vmem:[%s443 + $0x38] sm:$0xff]
        %vm1224 = vcmp.lt.f32.partialorder %v1216, %v1110
        %vm1225 = vcmp.lt.f32.partialorder %v1217, %v1125
        %vm1226 = vcmp.lt.f32.partialorder %v1218, %v1140
        %vm1227 = vcmp.lt.f32.partialorder %v1219, %v1155
        %vm1228 = vcmp.lt.f32.partialorder %v1220, %v1170
        %vm1229 = vcmp.lt.f32.partialorder %v1221, %v1185
        %vm1230 = vcmp.lt.f32.partialorder %v1222, %v1200
        %vm1231 = vcmp.lt.f32.partialorder %v1223, %v1215
        %v1232 = vsel %vm1224, 1, 0
        %v1233 = vsel %vm1225, 1, 0
        %v1234 = vsel %vm1226, 1, 0
        %v1235 = vsel %vm1227, 1, 0
        %v1236 = vsel %vm1228, 1, 0
        %v1237 = vsel %vm1229, 1, 0
        %v1238 = vsel %vm1230, 1, 0
        %v1239 = vsel %vm1231, 1, 0
        %v1240 = vcvt.s32.f32 %v1232
        %v1241 = vcvt.s32.f32 %v1233
        %v1242 = vcvt.s32.f32 %v1234
        %v1243 = vcvt.s32.f32 %v1235
        %v1244 = vcvt.s32.f32 %v1236
        %v1245 = vcvt.s32.f32 %v1237
        %v1246 = vcvt.s32.f32 %v1238
        %v1247 = vcvt.s32.f32 %v1239
        %1248 = vst.msk [vmem:[%s488] sm:$0xff] %vm524, %v1240
        %1249 = vst.msk [vmem:[%s488 + $0x8] sm:$0xff] %vm524, %v1241
        %1250 = vst.msk [vmem:[%s488 + $0x10] sm:$0xff] %vm524, %v1242
        %1251 = vst.msk [vmem:[%s488 + $0x18] sm:$0xff] %vm524, %v1243
        %1252 = vst.msk [vmem:[%s488 + $0x20] sm:$0xff] %vm524, %v1244
        %1253 = vst.msk [vmem:[%s488 + $0x28] sm:$0xff] %vm524, %v1245
        %1254 = vst.msk [vmem:[%s488 + $0x30] sm:$0xff] %vm524, %v1246
        %1255 = vst.msk [vmem:[%s488 + $0x38] sm:$0xff] %vm524, %v1247
        %v1257 = vsel %vm524, %v1240, 0
        %v1260 = vsel %vm524, %v1241, 0
        %v1263 = vsel %vm524, %v1242, 0
        %v1266 = vsel %vm524, %v1243, 0
        %v1269 = vsel %vm524, %v1244, 0
        %v1272 = vsel %vm524, %v1245, 0
        %v1275 = vsel %vm524, %v1246, 0
        %v1278 = vsel %vm524, %v1247, 0
        %1280 = vmatpush.msra.mxu0 0.0
        %1281 = vmatpush.msra.mxu0 0.0
        %1282 = vmatpush.msra.mxu0 0.0
        %1283 = vmatpush.msra.mxu0 0.0
        %1284 = vmatpush.msra.mxu0 0.0
        %1285 = vmatpush.msra.mxu0 0.0
        %1286 = vmatpush.msra.mxu0 0.0
        %1287 = vmatpush.msra.mxu0 0.0
        %1288 = vmatpush.msra.mxu0 0.0
        %1289 = vmatpush.msra.mxu0 0.0
        %1290 = vmatpush.msra.mxu0 0.0
        %1291 = vmatpush.msra.mxu0 0.0
        %1292 = vmatpush.msra.mxu0 0.0
        %1293 = vmatpush.msra.mxu0 0.0
        %1294 = vmatpush.msra.mxu0 %v504
        %1295 = vmatpush.msra.mxu0 %v503
        %1296 = vmatmul.f32.gmra.mxu0 %v1257
        %v1297 = vpop.f32.mrf.mxu0
        %v1298 = vadd.f32 0.0, %v1297
        %1299 = vmatmul.f32.gmra.mxu0 %v1260
        %v1300 = vpop.f32.mrf.mxu0
        %v1301 = vadd.f32 0.0, %v1300
        %1302 = vmatmul.f32.gmra.mxu0 %v1263
        %v1303 = vpop.f32.mrf.mxu0
        %v1304 = vadd.f32 0.0, %v1303
        %1305 = vmatmul.f32.gmra.mxu0 %v1266
        %v1306 = vpop.f32.mrf.mxu0
        %v1307 = vadd.f32 0.0, %v1306
        %1308 = vmatmul.f32.gmra.mxu0 %v1269
        %v1309 = vpop.f32.mrf.mxu0
        %v1310 = vadd.f32 0.0, %v1309
        %1311 = vmatmul.f32.gmra.mxu0 %v1272
        %v1312 = vpop.f32.mrf.mxu0
        %v1313 = vadd.f32 0.0, %v1312
        %1314 = vmatmul.f32.gmra.mxu0 %v1275
        %v1315 = vpop.f32.mrf.mxu0
        %v1316 = vadd.f32 0.0, %v1315
        %1317 = vmatmul.f32.gmra.mxu0 %v1278
        %v1318 = vpop.f32.mrf.mxu0
        %v1319 = vadd.f32 0.0, %v1318
        %1320 = vdwg.mxu0
        %1321 = vst.msk [vmem:[%s502] sm:$0xff] %vm590, %v1298
        %1322 = vst.msk [vmem:[%s502 + $0x8] sm:$0xff] %vm590, %v1301
        %1323 = vst.msk [vmem:[%s502 + $0x10] sm:$0xff] %vm590, %v1304
        %1324 = vst.msk [vmem:[%s502 + $0x18] sm:$0xff] %vm590, %v1307
        %1325 = vst.msk [vmem:[%s502 + $0x20] sm:$0xff] %vm590, %v1310
        %1326 = vst.msk [vmem:[%s502 + $0x28] sm:$0xff] %vm590, %v1313
        %1327 = vst.msk [vmem:[%s502 + $0x30] sm:$0xff] %vm590, %v1316
        %1328 = vst.msk [vmem:[%s502 + $0x38] sm:$0xff] %vm590, %v1319
        %v1329 = vld [vmem:[%s502] sm:$0xff]
        %v1330 = vadd.f32 %v1329, %v601
        %v1331 = vxor.u32 %v1330, 2147483648
        %v1332 = vmul.f32 %v1331, 1.442695
        %v1333 = vpow.pop %v1332
        %v1334 = vadd.f32 %v1333, 1.0
        %v1335 = vrcp.pop %v1334
        %v1336 = vmul.f32 %v1334, %v1335
        %v1337 = vsub.f32 1.0, %v1336
        %v1338 = vmul.f32 %v1335, %v1337
        %v1339 = vadd.f32 %v1335, %v1338
        %vm1340 = vweird.f32 %v1334
        %vm1341 = vweird.f32 %v1335
        %vm1342 = vmor %vm1340, %vm1341
        %v1343 = vsel %vm1342, %v1335, %v1339
        %v1344 = vand.u32 2147483647, %v1334
        %vm1345 = vcmp.eq.f32.partialorder %v1344, 8.507059e+37
        %v1346 = vand.u32 %v1334, 2147483648
        %v1347 = vor.u32 1.1754944e-38, %v1346
        %v1348 = vsel %vm1345, %v1347, %v1343
        %v1349 = vmul.f32 1.0, %v1348
        %1350 = vst.msk [vmem:[%s502] sm:$0xff] %vm590, %v1349
        %s1351 = scalar_lea.vmem %s502, 8 [#allocation11]
        %v1352 = vld [vmem:[%s1351] sm:$0xff]
        %v1354 = vsel %vm590, %v1349, 0
        %1356 = vmatpush.msra.mxu0 0.0
        %1357 = vmatpush.msra.mxu0 0.0
        %1358 = vmatpush.msra.mxu0 0.0
        %1359 = vmatpush.msra.mxu0 0.0
        %1360 = vmatpush.msra.mxu0 0.0
        %1361 = vmatpush.msra.mxu0 0.0
        %1362 = vmatpush.msra.mxu0 0.0
        %1363 = vmatpush.msra.mxu0 0.0
        %1364 = vmatpush.msra.mxu0 0.0
        %1365 = vmatpush.msra.mxu0 0.0
        %1366 = vmatpush.msra.mxu0 0.0
        %1367 = vmatpush.msra.mxu0 0.0
        %1368 = vmatpush.msra.mxu0 %v508
        %1369 = vmatpush.msra.mxu0 %v507
        %1370 = vmatpush.msra.mxu0 %v506
        %1371 = vmatpush.msra.mxu0 %v505
        %1372 = vmatmul.f32.gmra.mxu0 %v1354
        %v1373 = vpop.f32.mrf.mxu0
        %v1374 = vadd.f32 0.0, %v1373
        %1375 = vdwg.mxu0
        %v1376 = vadd.f32 %v1352, %v1374
        %v1377 = vadd.f32 %v1376, %v651
        %v1378 = vxor.u32 %v1377, 2147483648
        %v1379 = vmul.f32 %v1378, 1.442695
        %v1380 = vpow.pop %v1379
        %v1381 = vadd.f32 %v1380, 1.0
        %v1382 = vrcp.pop %v1381
        %v1383 = vmul.f32 %v1381, %v1382
        %v1384 = vsub.f32 1.0, %v1383
        %v1385 = vmul.f32 %v1382, %v1384
        %v1386 = vadd.f32 %v1382, %v1385
        %vm1387 = vweird.f32 %v1381
        %vm1388 = vweird.f32 %v1382
        %vm1389 = vmor %vm1387, %vm1388
        %v1390 = vsel %vm1389, %v1382, %v1386
        %v1391 = vand.u32 2147483647, %v1381
        %vm1392 = vcmp.eq.f32.partialorder %v1391, 8.507059e+37
        %v1393 = vand.u32 %v1381, 2147483648
        %v1394 = vor.u32 1.1754944e-38, %v1393
        %v1395 = vsel %vm1392, %v1394, %v1390
        %v1396 = vmul.f32 1.0, %v1395
        %1397 = vst.msk [vmem:[%s1351] sm:$0xff] %vm590, %v1396
        %s1398 = scalar_lea.vmem %s502, 16 [#allocation11]
        %v1399 = vld [vmem:[%s1398] sm:$0xff]
        %v1401 = vsel %vm590, %v1396, 0
        %1403 = vmatpush.msra.mxu0 0.0
        %1404 = vmatpush.msra.mxu0 0.0
        %1405 = vmatpush.msra.mxu0 0.0
        %1406 = vmatpush.msra.mxu0 0.0
        %1407 = vmatpush.msra.mxu0 0.0
        %1408 = vmatpush.msra.mxu0 0.0
        %1409 = vmatpush.msra.mxu0 0.0
        %1410 = vmatpush.msra.mxu0 0.0
        %1411 = vmatpush.msra.mxu0 0.0
        %1412 = vmatpush.msra.mxu0 0.0
        %1413 = vmatpush.msra.mxu0 0.0
        %1414 = vmatpush.msra.mxu0 0.0
        %1415 = vmatpush.msra.mxu0 %v508
        %1416 = vmatpush.msra.mxu0 %v507
        %1417 = vmatpush.msra.mxu0 %v506
        %1418 = vmatpush.msra.mxu0 %v505
        %1419 = vmatmul.f32.gmra.mxu0 %v1401
        %v1420 = vpop.f32.mrf.mxu0
        %v1421 = vadd.f32 0.0, %v1420
        %1422 = vdwg.mxu0
        %v1423 = vadd.f32 %v1399, %v1421
        %v1424 = vadd.f32 %v1423, %v651
        %v1425 = vxor.u32 %v1424, 2147483648
        %v1426 = vmul.f32 %v1425, 1.442695
        %v1427 = vpow.pop %v1426
        %v1428 = vadd.f32 %v1427, 1.0
        %v1429 = vrcp.pop %v1428
        %v1430 = vmul.f32 %v1428, %v1429
        %v1431 = vsub.f32 1.0, %v1430
        %v1432 = vmul.f32 %v1429, %v1431
        %v1433 = vadd.f32 %v1429, %v1432
        %vm1434 = vweird.f32 %v1428
        %vm1435 = vweird.f32 %v1429
        %vm1436 = vmor %vm1434, %vm1435
        %v1437 = vsel %vm1436, %v1429, %v1433
        %v1438 = vand.u32 2147483647, %v1428
        %vm1439 = vcmp.eq.f32.partialorder %v1438, 8.507059e+37
        %v1440 = vand.u32 %v1428, 2147483648
        %v1441 = vor.u32 1.1754944e-38, %v1440
        %v1442 = vsel %vm1439, %v1441, %v1437
        %v1443 = vmul.f32 1.0, %v1442
        %1444 = vst.msk [vmem:[%s1398] sm:$0xff] %vm590, %v1443
        %s1445 = scalar_lea.vmem %s502, 24 [#allocation11]
        %v1446 = vld [vmem:[%s1445] sm:$0xff]
        %v1448 = vsel %vm590, %v1443, 0
        %1450 = vmatpush.msra.mxu0 0.0
        %1451 = vmatpush.msra.mxu0 0.0
        %1452 = vmatpush.msra.mxu0 0.0
        %1453 = vmatpush.msra.mxu0 0.0
        %1454 = vmatpush.msra.mxu0 0.0
        %1455 = vmatpush.msra.mxu0 0.0
        %1456 = vmatpush.msra.mxu0 0.0
        %1457 = vmatpush.msra.mxu0 0.0
        %1458 = vmatpush.msra.mxu0 0.0
        %1459 = vmatpush.msra.mxu0 0.0
        %1460 = vmatpush.msra.mxu0 0.0
        %1461 = vmatpush.msra.mxu0 0.0
        %1462 = vmatpush.msra.mxu0 %v508
        %1463 = vmatpush.msra.mxu0 %v507
        %1464 = vmatpush.msra.mxu0 %v506
        %1465 = vmatpush.msra.mxu0 %v505
        %1466 = vmatmul.f32.gmra.mxu0 %v1448
        %v1467 = vpop.f32.mrf.mxu0
        %v1468 = vadd.f32 0.0, %v1467
        %1469 = vdwg.mxu0
        %v1470 = vadd.f32 %v1446, %v1468
        %v1471 = vadd.f32 %v1470, %v651
        %v1472 = vxor.u32 %v1471, 2147483648
        %v1473 = vmul.f32 %v1472, 1.442695
        %v1474 = vpow.pop %v1473
        %v1475 = vadd.f32 %v1474, 1.0
        %v1476 = vrcp.pop %v1475
        %v1477 = vmul.f32 %v1475, %v1476
        %v1478 = vsub.f32 1.0, %v1477
        %v1479 = vmul.f32 %v1476, %v1478
        %v1480 = vadd.f32 %v1476, %v1479
        %vm1481 = vweird.f32 %v1475
        %vm1482 = vweird.f32 %v1476
        %vm1483 = vmor %vm1481, %vm1482
        %v1484 = vsel %vm1483, %v1476, %v1480
        %v1485 = vand.u32 2147483647, %v1475
        %vm1486 = vcmp.eq.f32.partialorder %v1485, 8.507059e+37
        %v1487 = vand.u32 %v1475, 2147483648
        %v1488 = vor.u32 1.1754944e-38, %v1487
        %v1489 = vsel %vm1486, %v1488, %v1484
        %v1490 = vmul.f32 1.0, %v1489
        %1491 = vst.msk [vmem:[%s1445] sm:$0xff] %vm590, %v1490
        %s1492 = scalar_lea.vmem %s502, 32 [#allocation11]
        %v1493 = vld [vmem:[%s1492] sm:$0xff]
        %v1495 = vsel %vm590, %v1490, 0
        %1497 = vmatpush.msra.mxu0 0.0
        %1498 = vmatpush.msra.mxu0 0.0
        %1499 = vmatpush.msra.mxu0 0.0
        %1500 = vmatpush.msra.mxu0 0.0
        %1501 = vmatpush.msra.mxu0 0.0
        %1502 = vmatpush.msra.mxu0 0.0
        %1503 = vmatpush.msra.mxu0 0.0
        %1504 = vmatpush.msra.mxu0 0.0
        %1505 = vmatpush.msra.mxu0 0.0
        %1506 = vmatpush.msra.mxu0 0.0
        %1507 = vmatpush.msra.mxu0 0.0
        %1508 = vmatpush.msra.mxu0 0.0
        %1509 = vmatpush.msra.mxu0 %v508
        %1510 = vmatpush.msra.mxu0 %v507
        %1511 = vmatpush.msra.mxu0 %v506
        %1512 = vmatpush.msra.mxu0 %v505
        %1513 = vmatmul.f32.gmra.mxu0 %v1495
        %v1514 = vpop.f32.mrf.mxu0
        %v1515 = vadd.f32 0.0, %v1514
        %1516 = vdwg.mxu0
        %v1517 = vadd.f32 %v1493, %v1515
        %v1518 = vadd.f32 %v1517, %v651
        %v1519 = vxor.u32 %v1518, 2147483648
        %v1520 = vmul.f32 %v1519, 1.442695
        %v1521 = vpow.pop %v1520
        %v1522 = vadd.f32 %v1521, 1.0
        %v1523 = vrcp.pop %v1522
        %v1524 = vmul.f32 %v1522, %v1523
        %v1525 = vsub.f32 1.0, %v1524
        %v1526 = vmul.f32 %v1523, %v1525
        %v1527 = vadd.f32 %v1523, %v1526
        %vm1528 = vweird.f32 %v1522
        %vm1529 = vweird.f32 %v1523
        %vm1530 = vmor %vm1528, %vm1529
        %v1531 = vsel %vm1530, %v1523, %v1527
        %v1532 = vand.u32 2147483647, %v1522
        %vm1533 = vcmp.eq.f32.partialorder %v1532, 8.507059e+37
        %v1534 = vand.u32 %v1522, 2147483648
        %v1535 = vor.u32 1.1754944e-38, %v1534
        %v1536 = vsel %vm1533, %v1535, %v1531
        %v1537 = vmul.f32 1.0, %v1536
        %1538 = vst.msk [vmem:[%s1492] sm:$0xff] %vm590, %v1537
        %s1539 = scalar_lea.vmem %s502, 40 [#allocation11]
        %v1540 = vld [vmem:[%s1539] sm:$0xff]
        %v1542 = vsel %vm590, %v1537, 0
        %1544 = vmatpush.msra.mxu0 0.0
        %1545 = vmatpush.msra.mxu0 0.0
        %1546 = vmatpush.msra.mxu0 0.0
        %1547 = vmatpush.msra.mxu0 0.0
        %1548 = vmatpush.msra.mxu0 0.0
        %1549 = vmatpush.msra.mxu0 0.0
        %1550 = vmatpush.msra.mxu0 0.0
        %1551 = vmatpush.msra.mxu0 0.0
        %1552 = vmatpush.msra.mxu0 0.0
        %1553 = vmatpush.msra.mxu0 0.0
        %1554 = vmatpush.msra.mxu0 0.0
        %1555 = vmatpush.msra.mxu0 0.0
        %1556 = vmatpush.msra.mxu0 %v508
        %1557 = vmatpush.msra.mxu0 %v507
        %1558 = vmatpush.msra.mxu0 %v506
        %1559 = vmatpush.msra.mxu0 %v505
        %1560 = vmatmul.f32.gmra.mxu0 %v1542
        %v1561 = vpop.f32.mrf.mxu0
        %v1562 = vadd.f32 0.0, %v1561
        %1563 = vdwg.mxu0
        %v1564 = vadd.f32 %v1540, %v1562
        %v1565 = vadd.f32 %v1564, %v651
        %v1566 = vxor.u32 %v1565, 2147483648
        %v1567 = vmul.f32 %v1566, 1.442695
        %v1568 = vpow.pop %v1567
        %v1569 = vadd.f32 %v1568, 1.0
        %v1570 = vrcp.pop %v1569
        %v1571 = vmul.f32 %v1569, %v1570
        %v1572 = vsub.f32 1.0, %v1571
        %v1573 = vmul.f32 %v1570, %v1572
        %v1574 = vadd.f32 %v1570, %v1573
        %vm1575 = vweird.f32 %v1569
        %vm1576 = vweird.f32 %v1570
        %vm1577 = vmor %vm1575, %vm1576
        %v1578 = vsel %vm1577, %v1570, %v1574
        %v1579 = vand.u32 2147483647, %v1569
        %vm1580 = vcmp.eq.f32.partialorder %v1579, 8.507059e+37
        %v1581 = vand.u32 %v1569, 2147483648
        %v1582 = vor.u32 1.1754944e-38, %v1581
        %v1583 = vsel %vm1580, %v1582, %v1578
        %v1584 = vmul.f32 1.0, %v1583
        %1585 = vst.msk [vmem:[%s1539] sm:$0xff] %vm590, %v1584
        %s1586 = scalar_lea.vmem %s502, 48 [#allocation11]
        %v1587 = vld [vmem:[%s1586] sm:$0xff]
        %v1589 = vsel %vm590, %v1584, 0
        %1591 = vmatpush.msra.mxu0 0.0
        %1592 = vmatpush.msra.mxu0 0.0
        %1593 = vmatpush.msra.mxu0 0.0
        %1594 = vmatpush.msra.mxu0 0.0
        %1595 = vmatpush.msra.mxu0 0.0
        %1596 = vmatpush.msra.mxu0 0.0
        %1597 = vmatpush.msra.mxu0 0.0
        %1598 = vmatpush.msra.mxu0 0.0
        %1599 = vmatpush.msra.mxu0 0.0
        %1600 = vmatpush.msra.mxu0 0.0
        %1601 = vmatpush.msra.mxu0 0.0
        %1602 = vmatpush.msra.mxu0 0.0
        %1603 = vmatpush.msra.mxu0 %v508
        %1604 = vmatpush.msra.mxu0 %v507
        %1605 = vmatpush.msra.mxu0 %v506
        %1606 = vmatpush.msra.mxu0 %v505
        %1607 = vmatmul.f32.gmra.mxu0 %v1589
        %v1608 = vpop.f32.mrf.mxu0
        %v1609 = vadd.f32 0.0, %v1608
        %1610 = vdwg.mxu0
        %v1611 = vadd.f32 %v1587, %v1609
        %v1612 = vadd.f32 %v1611, %v651
        %v1613 = vxor.u32 %v1612, 2147483648
        %v1614 = vmul.f32 %v1613, 1.442695
        %v1615 = vpow.pop %v1614
        %v1616 = vadd.f32 %v1615, 1.0
        %v1617 = vrcp.pop %v1616
        %v1618 = vmul.f32 %v1616, %v1617
        %v1619 = vsub.f32 1.0, %v1618
        %v1620 = vmul.f32 %v1617, %v1619
        %v1621 = vadd.f32 %v1617, %v1620
        %vm1622 = vweird.f32 %v1616
        %vm1623 = vweird.f32 %v1617
        %vm1624 = vmor %vm1622, %vm1623
        %v1625 = vsel %vm1624, %v1617, %v1621
        %v1626 = vand.u32 2147483647, %v1616
        %vm1627 = vcmp.eq.f32.partialorder %v1626, 8.507059e+37
        %v1628 = vand.u32 %v1616, 2147483648
        %v1629 = vor.u32 1.1754944e-38, %v1628
        %v1630 = vsel %vm1627, %v1629, %v1625
        %v1631 = vmul.f32 1.0, %v1630
        %1632 = vst.msk [vmem:[%s1586] sm:$0xff] %vm590, %v1631
        %s1633 = scalar_lea.vmem %s502, 56 [#allocation11]
        %v1634 = vld [vmem:[%s1633] sm:$0xff]
        %v1636 = vsel %vm590, %v1631, 0
        %1638 = vmatpush.msra.mxu0 0.0
        %1639 = vmatpush.msra.mxu0 0.0
        %1640 = vmatpush.msra.mxu0 0.0
        %1641 = vmatpush.msra.mxu0 0.0
        %1642 = vmatpush.msra.mxu0 0.0
        %1643 = vmatpush.msra.mxu0 0.0
        %1644 = vmatpush.msra.mxu0 0.0
        %1645 = vmatpush.msra.mxu0 0.0
        %1646 = vmatpush.msra.mxu0 0.0
        %1647 = vmatpush.msra.mxu0 0.0
        %1648 = vmatpush.msra.mxu0 0.0
        %1649 = vmatpush.msra.mxu0 0.0
        %1650 = vmatpush.msra.mxu0 %v508
        %1651 = vmatpush.msra.mxu0 %v507
        %1652 = vmatpush.msra.mxu0 %v506
        %1653 = vmatpush.msra.mxu0 %v505
        %1654 = vmatmul.f32.gmra.mxu0 %v1636
        %v1655 = vpop.f32.mrf.mxu0
        %v1656 = vadd.f32 0.0, %v1655
        %1657 = vdwg.mxu0
        %v1658 = vadd.f32 %v1634, %v1656
        %v1659 = vadd.f32 %v1658, %v651
        %v1660 = vxor.u32 %v1659, 2147483648
        %v1661 = vmul.f32 %v1660, 1.442695
        %v1662 = vpow.pop %v1661
        %v1663 = vadd.f32 %v1662, 1.0
        %v1664 = vrcp.pop %v1663
        %v1665 = vmul.f32 %v1663, %v1664
        %v1666 = vsub.f32 1.0, %v1665
        %v1667 = vmul.f32 %v1664, %v1666
        %v1668 = vadd.f32 %v1664, %v1667
        %vm1669 = vweird.f32 %v1663
        %vm1670 = vweird.f32 %v1664
        %vm1671 = vmor %vm1669, %vm1670
        %v1672 = vsel %vm1671, %v1664, %v1668
        %v1673 = vand.u32 2147483647, %v1663
        %vm1674 = vcmp.eq.f32.partialorder %v1673, 8.507059e+37
        %v1675 = vand.u32 %v1663, 2147483648
        %v1676 = vor.u32 1.1754944e-38, %v1675
        %v1677 = vsel %vm1674, %v1676, %v1672
        %v1678 = vmul.f32 1.0, %v1677
        %1679 = vst.msk [vmem:[%s1633] sm:$0xff] %vm590, %v1678
        %s1680 = sand.u32 %s247, 1
        %s1681 = scalar_lea.sflag [#allocation4], %s1680
        %s1682 = sand.u32 %s247, 1
        %s1683 = smul.addr %s1682, 64
        %s1684 = scalar_lea.vmem [#allocation8], %s1683
        %s1685 = sand.u32 %s35, 1
        %s1686 = scalar_lea.sflag [#allocation10], %s1685
        %s1687 = sand.u32 %s273, 1
        %s1688 = smul.addr %s1687, 64
        %s1689 = scalar_lea.vmem [#allocation9], %s1688
        %s1690 = sand.u32 %s35, 1
        %s1691 = scalar_lea.sflag [#allocation10], %s1690
        %s1692 = sand.u32 %s299, 1
        %s1693 = smul.addr %s1692, 64
        %s1694 = scalar_lea.vmem [#allocation11], %s1693
        // Predicated region
        $region69: #{tpu_custom_call.1} parent=55 // pred_check
          %p1695 = pneg %p257
        $region70: #{tpu_custom_call.1} parent=55 // pred_check_branch
          %1697 = sbr.rel (%p1695) target = $region72
        $region71: #{tpu_custom_call.1} parent=55 // pred_region
          %1699 = vsyncadd %s1681, 0
          %s1700 = smul.addr %s35, 8
          %s1701 = scalar_lea.hbm %s9, %s1700
          %s1702 = sshll.u32 %s1684, 4
          %s1703 = int_to_ptr.vmem [resolvable:$true] %s1702
          %s1704 = sshll.u32 %s1701, 4
          %s1705 = int_to_ptr.hbm [resolvable:$true] %s1704
          %1710 = dma.vmem_to_hbm [thread:$0]  %s1703, 1024, %s1705, %s1681, 128, 256, 8
        $region72: #{tpu_custom_call.1} parent=55 // pred_fallthru
          _
        // Predicated region
        $region73: #{tpu_custom_call.1} parent=55 // pred_check
          %p1711 = pneg %p283
        $region74: #{tpu_custom_call.1} parent=55 // pred_check_branch
          %1713 = sbr.rel (%p1711) target = $region76
        $region75: #{tpu_custom_call.1} parent=55 // pred_region
          %1715 = vsyncadd %s1686, 0
          %s1716 = smul.addr %s35, 8
          %s1717 = scalar_lea.hbm %s10, %s1716
          %s1718 = sshll.u32 %s1689, 4
          %s1719 = int_to_ptr.vmem [resolvable:$true] %s1718
          %s1720 = sshll.u32 %s1717, 4
          %s1721 = int_to_ptr.hbm [resolvable:$true] %s1720
          %1726 = dma.vmem_to_hbm [thread:$0]  %s1719, 1024, %s1721, %s1686, 128, 256, 8
        $region76: #{tpu_custom_call.1} parent=55 // pred_fallthru
          _
        // Predicated region
        $region77: #{tpu_custom_call.1} parent=55 // pred_check
          %p1727 = pneg %p309
        $region78: #{tpu_custom_call.1} parent=55 // pred_check_branch
          %1729 = sbr.rel (%p1727) target = $region80
        $region79: #{tpu_custom_call.1} parent=55 // pred_region
          %1731 = vsyncadd %s1691, 0
          %s1732 = smul.addr %s35, 8
          %s1733 = scalar_lea.hbm %s11, %s1732
          %s1734 = sshll.u32 %s1694, 4
          %s1735 = int_to_ptr.vmem [resolvable:$true] %s1734
          %s1736 = sshll.u32 %s1733, 4
          %s1737 = int_to_ptr.hbm [resolvable:$true] %s1736
          %1742 = dma.vmem_to_hbm [thread:$0]  %s1735, 1024, %s1737, %s1691, 128, 256, 8
        $region80: #{tpu_custom_call.1} parent=55 // pred_fallthru
          _
      $region56: #{tpu_custom_call.1} parent=5 // pred_fallthru
        _
      %p1743 = scmp.le.s32.totalorder 2, %s30
      // Predicated region
      $region81: #{tpu_custom_call.1} parent=5 // pred_check
        %p1744 = pneg %p1743
      $region82: #{tpu_custom_call.1} parent=5 // pred_check_branch
        %1746 = sbr.rel (%p1744) target = $region84
      $region83: #{tpu_custom_call.1} parent=5 // pred_region
        %s1747 = ssub.s32 %s30, 2
        // Predicated region
        $region85: #{tpu_custom_call.1} parent=83 // pred_check
          %p1748 = pneg %p263
        $region86: #{tpu_custom_call.1} parent=83 // pred_check_branch
          %1750 = sbr.rel (%p1748) target = $region88
        $region87: #{tpu_custom_call.1} parent=83 // pred_region
          %s1751 = sand.u32 %s248, 1
          %s1752 = scalar_lea.sflag [#allocation4], %s1751
          %s1753 = sand.u32 %s248, 1
          %s1754 = smul.addr %s1753, 64
          %s1755 = scalar_lea.vmem [#allocation8], %s1754
          %1757 = dma.done %s1752, 1024
        $region88: #{tpu_custom_call.1} parent=83 // pred_fallthru
          _
        // Predicated region
        $region89: #{tpu_custom_call.1} parent=83 // pred_check
          %p1758 = pneg %p289
        $region90: #{tpu_custom_call.1} parent=83 // pred_check_branch
          %1760 = sbr.rel (%p1758) target = $region92
        $region91: #{tpu_custom_call.1} parent=83 // pred_region
          %s1761 = sand.u32 %s36, 1
          %s1762 = scalar_lea.sflag [#allocation10], %s1761
          %s1763 = sand.u32 %s274, 1
          %s1764 = smul.addr %s1763, 64
          %s1765 = scalar_lea.vmem [#allocation9], %s1764
          %1767 = dma.done %s1762, 1024
        $region92: #{tpu_custom_call.1} parent=83 // pred_fallthru
          _
        // Predicated region
        $region93: #{tpu_custom_call.1} parent=83 // pred_check
          %p1768 = pneg %p315
        $region94: #{tpu_custom_call.1} parent=83 // pred_check_branch
          %1770 = sbr.rel (%p1768) target = $region96
        $region95: #{tpu_custom_call.1} parent=83 // pred_region
          %s1771 = sand.u32 %s36, 1
          %s1772 = scalar_lea.sflag [#allocation10], %s1771
          %s1773 = sand.u32 %s300, 1
          %s1774 = smul.addr %s1773, 64
          %s1775 = scalar_lea.vmem [#allocation11], %s1774
          %1777 = dma.done %s1772, 1024
        $region96: #{tpu_custom_call.1} parent=83 // pred_fallthru
          _
      $region84: #{tpu_custom_call.1} parent=5 // pred_fallthru
        _
    $region6: #{tpu_custom_call.1} parent=1 // loop_footer
      %s34 = sadd.s32 1, %s30
    $region7: #{tpu_custom_call.1} parent=1 // loop_footer_branch
      %29 = sbr.rel target = $region3
    $region8: #{tpu_custom_call.1} parent=1 // loop_exit
      _
    %1778 = vsyncpa [#allocation3], 1
    %s1779 = scalar_lea.sflag [#allocation3], 1
    %1780 = vsyncpa %s1779, 1
    %1781 = vsyncpa [#allocation6], 1
    %s1782 = scalar_lea.sflag [#allocation6], 1
    %1783 = vsyncpa %s1782, 1
    %1784 = vsyncpa [#allocation4], 1
    %s1785 = scalar_lea.sflag [#allocation4], 1
    %1786 = vsyncpa %s1785, 1
    %1787 = vsyncpa [#allocation10], 1
    %s1788 = scalar_lea.sflag [#allocation10], 1
    %1789 = vsyncpa %s1788, 1

</llo_original>
